<compile_context>
chip_gen: v7x
topology: tpu7x:2x2x1
jax: 0.10.0
libtpu: 0.0.40
codegen_flags: <defaults>
</compile_context>

<pallas_src>
import jax
import jax.numpy as jnp
from jax.experimental import pallas as pl
from jax.experimental.pallas import tpu as pltpu


# TODO(synk): the PyTorch `MLP` class is not shown; a Linear-ReLU-Linear-ReLU-Linear
# stack is assumed for both scale MLPs.
def _mlp_t(x, w0, b0, w1, b1, w2, b2):
    """MLP in transposed orientation: x [F, L] bf16, w [out, in] bf16, b [out, 1] f32."""
    h = jnp.maximum(jnp.dot(w0, x, preferred_element_type=jnp.float32) + b0, 0.0)
    h = jnp.maximum(jnp.dot(w1, h.astype(w1.dtype), preferred_element_type=jnp.float32) + b1, 0.0)
    return jnp.dot(w2, h.astype(w2.dtype), preferred_element_type=jnp.float32) + b2


def _tree_sum(parts):
    """Balanced tree of VPU adds over a list of equal-shape arrays."""
    while len(parts) > 1:
        nxt = [parts[a] + parts[a + 1] for a in range(0, len(parts) - 1, 2)]
        if len(parts) % 2:
            nxt.append(parts[-1])
        parts = nxt
    return parts[0]


def _shift_kernel(inv_na_ref,
                  pw_ref, rel_ref, pwb_ref, relb_ref,
                  w0p, b0p, w1p, b1p, w2p, b2p,
                  w0r, b0r, w1r, b1r, w2r, b2r,
                  out_ref):
    ti = pw_ref.shape[-1]          # atom rows (i) handled by this block
    lanes = rel_ref.shape[-1]      # = N_j * TI (i-fastest: p = j*TI + i)
    n_j = lanes // ti              # number of neighbors j (= N)

    # Exact 1/num_atoms, precomputed in the wrapper (f32 SMEM scalar prefetch).
    inv_n = inv_na_ref[pl.program_id(0)]

    # Scale MLPs (lane-dense bf16 MXU matmuls, f32 accumulation):
    #   psi(h_i)  -> [K, TI],  phi(h_ij) -> [K, N*TI]
    sp = _mlp_t(pw_ref[...], w0p[...], b0p[...], w1p[...], b1p[...], w2p[...], b2p[...])
    sr = _mlp_t(rel_ref[...], w0r[...], b0r[...], w1r[...], b1r[...], w2r[...], b2r[...])

    for d in range(3):             # static unroll over the x/y/z component
        pwb_d = pwb_ref[d].astype(jnp.float32)                     # [K, TI]
        relb_d = relb_ref[d].astype(jnp.float32)                   # [K, N*TI] (j-mask baked in)
        pw_d = jnp.sum(sp * pwb_d, axis=0, keepdims=True)          # [1, TI]
        rel_row = jnp.sum(sr * relb_d, axis=0, keepdims=True)      # [1, N*TI]
        # j-sum: accumulate the N_j contiguous [1, TI] lane slices (no matmul,
        # no selection matrix). Slices are vreg-aligned when TI % 128 == 0.
        rel_d = _tree_sum([rel_row[:, j * ti:(j + 1) * ti] for j in range(n_j)])  # [1, TI]
        out_ref[pl.ds(d, 1), :] = ((pw_d + rel_d * inv_n) * inv_n).astype(out_ref.dtype)


def _pick_row_block(n, max_lanes=16384):
    """Choose (TI, N_padded): TI atom rows per grid step along the pair axis.

    Small problems (N*N <= max_lanes) use a single block with TI = N.
    Otherwise TI is a multiple of 128 (lane-aligned slices, lane-dense output)
    and the atom axis is padded up to a multiple of TI (padded rows produce
    discarded output; padded basis rows are zero).
    """
    if n * n <= max_lanes:
        return n, n
    ti = max(128, (max_lanes // n) // 128 * 128)
    if ti >= n:
        return n, n
    n_pad = -(-n // ti) * ti
    return ti, n_pad


def _prep_mlp(p):
    """Transpose Linear weights to [out, in] bf16 and biases to [out, 1] f32."""
    w0, b0, w1, b1, w2, b2 = p
    c = jnp.bfloat16
    return (w0.T.astype(c), b0.reshape(-1, 1).astype(jnp.float32),
            w1.T.astype(c), b1.reshape(-1, 1).astype(jnp.float32),
            w2.T.astype(c), b2.reshape(-1, 1).astype(jnp.float32))


def dense_equivariant_shift(pointwise_features, relative_features,
                            pointwise_basis, relative_basis,
                            masked_elements, params, *, max_lanes=16384):
    B, N, F = pointwise_features.shape
    K = pointwise_basis.shape[2]
    c = jnp.bfloat16

    ti, n_pad = _pick_row_block(N, max_lanes)
    nblk = n_pad // ti
    lanes = ti * N
    pad_i = n_pad - N

    # Exact 1/num_atoms (matches reference divide-by-num_atoms semantics,
    # including inf for a fully masked batch element).
    num_atoms = jnp.sum(~masked_elements, axis=-1).astype(jnp.float32)
    inv_num_atoms = 1.0 / num_atoms                                               # [B] f32 -> SMEM

    unmasked_j = (~masked_elements).astype(relative_basis.dtype)                  # [B, N]

    # ---- layout glue: atoms (i) on the lane axis, i-fastest pair axis, bf16 ----
    # TODO(synk): these O(N^2*F) transposes/casts are part of the end-to-end HBM
    # budget; in the full module the upstream _process_features should emit this
    # layout directly.
    pw = jnp.transpose(pointwise_features, (0, 2, 1))                             # [B, F, N]
    if pad_i:
        pw = jnp.pad(pw, ((0, 0), (0, 0), (0, pad_i)))
    pw_feat = pw.reshape(B, F, nblk, ti).transpose(0, 2, 1, 3).astype(c)          # [B, nblk, F, TI]

    pb = jnp.transpose(pointwise_basis, (0, 3, 2, 1))                             # [B, 3, K, N]
    if pad_i:
        pb = jnp.pad(pb, ((0, 0), (0, 0), (0, 0), (0, pad_i)))
    pwb = pb.reshape(B, 3, K, nblk, ti).transpose(0, 3, 1, 2, 4).astype(c)        # [B, nblk, 3, K, TI]

    rf = jnp.transpose(relative_features, (0, 3, 2, 1))                           # [B, F, N_j, N_i]
    if pad_i:
        rf = jnp.pad(rf, ((0, 0), (0, 0), (0, 0), (0, pad_i)))
    rel_feat = (rf.reshape(B, F, N, nblk, ti)
                  .transpose(0, 3, 1, 2, 4)                                       # [B, nblk, F, N_j, TI]
                  .reshape(B, nblk, F, lanes).astype(c))                          # p = j*TI + i

    rb = relative_basis * unmasked_j[:, None, :, None, None]                      # bake j-mask in
    rb = jnp.transpose(rb, (0, 4, 3, 2, 1))                                       # [B, 3, K, N_j, N_i]
    if pad_i:
        rb = jnp.pad(rb, ((0, 0), (0, 0), (0, 0), (0, 0), (0, pad_i)))
    relb = (rb.reshape(B, 3, K, N, nblk, ti)
              .transpose(0, 4, 1, 2, 3, 5)                                        # [B, nblk, 3, K, N_j, TI]
              .reshape(B, nblk, 3, K, lanes).astype(c))

    weights = _prep_mlp(params["pointwise"]) + _prep_mlp(params["relative"])

    def _fixed(rank):
        def imap(b, t, inv_ref):
            return (0,) * rank
        return imap

    in_specs = [
        pl.BlockSpec((None, None, F, ti), lambda b, t, inv_ref: (b, t, 0, 0)),        # pointwise feats
        pl.BlockSpec((None, None, F, lanes), lambda b, t, inv_ref: (b, t, 0, 0)),     # relative feats
        pl.BlockSpec((None, None, 3, K, ti), lambda b, t, inv_ref: (b, t, 0, 0, 0)),  # pointwise basis
        pl.BlockSpec((None, None, 3, K, lanes), lambda b, t, inv_ref: (b, t, 0, 0, 0)),  # relative basis
    ] + [pl.BlockSpec(w.shape, _fixed(w.ndim)) for w in weights]                   # resident weights

    out_specs = pl.BlockSpec((None, None, 3, ti), lambda b, t, inv_ref: (b, t, 0, 0))

    out = pl.pallas_call(
        _shift_kernel,
        out_shape=jax.ShapeDtypeStruct((B, nblk, 3, ti), jnp.float32),
        grid_spec=pltpu.PrefetchScalarGridSpec(
            num_scalar_prefetch=1,
            grid=(B, nblk),
            in_specs=in_specs,
            out_specs=out_specs,
        ),
        compiler_params=pltpu.CompilerParams(
            dimension_semantics=("parallel", "parallel"),
            vmem_limit_bytes=32 * 1024 * 1024),
    )(inv_num_atoms, pw_feat, rel_feat, pwb, relb, *weights)

    # [B, nblk, 3, TI] -> [B, N_pad, 3] -> [B, N, 3]
    shift = jnp.transpose(out, (0, 1, 3, 2)).reshape(B, n_pad, 3)
    return shift[:, :N, :]


# ------------------------- deterministic parameter init -------------------------
def init_mlp_params(key, in_dim, hidden_dims, out_dim):
    dims = [in_dim] + list(hidden_dims) + [out_dim]
    params = []
    for din, dout in zip(dims[:-1], dims[1:]):
        key, wk, bk = jax.random.split(key, 3)
        bound = din ** -0.5                      # PyTorch nn.Linear default init range
        w = jax.random.uniform(wk, (din, dout), jnp.float32, -bound, bound)
        b = jax.random.uniform(bk, (1, dout), jnp.float32, -bound, bound)
        params += [w, b]
    return tuple(params)


# ---------------------- pure-JAX reference (mirrors PyTorch) --------------------
def _mlp_ref(x, p):
    w0, b0, w1, b1, w2, b2 = p
    h = jax.nn.relu(x @ w0 + b0[0])
    h = jax.nn.relu(h @ w1 + b1[0])
    return h @ w2 + b2[0]


def reference_calc_shift(pointwise_features, relative_features, pointwise_basis,
                         relative_basis, masked_elements, params_p, params_r):
    num_atoms = jnp.sum(~masked_elements, axis=-1).astype(jnp.float32)        # [B]
    pointwise_shift = pointwise_basis * _mlp_ref(pointwise_features, params_p)[..., None]
    relative_shift = relative_basis * _mlp_ref(relative_features, params_r)[..., None]
    unmasked = (~masked_elements)[:, None, :, None, None]
    relative_shift = relative_shift * unmasked
    relative_shift = relative_shift.sum(-3) / num_atoms[:, None, None, None]
    all_shifts = pointwise_shift + relative_shift
    return all_shifts.sum(-2) / num_atoms[:, None, None]


if __name__ == "__main__":
    def run_case(key, B, N, F, K, hidden, n_masked):
        keys = jax.random.split(key, 6)
        # TODO(synk): basis.get_equivariant_features_and_basis / _process_features
        # are abstract in the PyTorch module; synthetic stand-ins are used.
        pointwise_features = jax.random.normal(keys[0], (B, N, F), jnp.float32)
        relative_features = jax.random.normal(keys[1], (B, N, N, F), jnp.float32)
        pointwise_basis = jax.random.normal(keys[2], (B, N, K, 3), jnp.float32)
        relative_basis = jax.random.normal(keys[3], (B, N, N, K, 3), jnp.float32)
        masked_elements = jnp.zeros((B, N), dtype=bool)
        if n_masked:
            masked_elements = masked_elements.at[1, N - n_masked:].set(True)

        params_p = init_mlp_params(keys[4], F, hidden, K)   # _shift_with_pointwise_mlp
        params_r = init_mlp_params(keys[5], F, hidden, K)   # _shift_with_relative_mlp
        params = {"pointwise": params_p, "relative": params_r}

        shift = dense_equivariant_shift(pointwise_features, relative_features,
                                        pointwise_basis, relative_basis,
                                        masked_elements, params)
        shift = jax.block_until_ready(shift)

        ref = reference_calc_shift(pointwise_features, relative_features,
                                   pointwise_basis, relative_basis,
                                   masked_elements, params_p, params_r)

        assert shift.shape == (B, N, 3)
        assert bool(jnp.all(jnp.isfinite(shift)))
        assert bool(jnp.allclose(shift, ref, atol=2e-2, rtol=2e-2)), "mismatch vs reference"

    key = jax.random.PRNGKey(0)
    k1, k2 = jax.random.split(key)
    # Small single-block case (whole N*N pair axis in one tile).
    run_case(k1, B=2, N=8, F=32, K=2, hidden=(32, 32), n_masked=2)
    # Larger case exercising the blocked / padded path (N > 128 -> TI=128, i padded to 256).
    run_case(k2, B=2, N=160, F=16, K=2, hidden=(16, 16), n_masked=5)
    print("KERNEL_OK")
</pallas_src>

<mosaic_0001>
module attributes {stable_mosaic.version = 11 : i64} {
  func.func @_shift_kernel(%arg0: i32, %arg1: i32, %arg2: memref<2xf32, #tpu.memory_space<smem>>, %arg3: memref<1x1x32x8xbf16, #tpu.memory_space<vmem>>, %arg4: memref<1x1x32x64xbf16, #tpu.memory_space<vmem>>, %arg5: memref<1x1x3x2x8xbf16, #tpu.memory_space<vmem>>, %arg6: memref<1x1x3x2x64xbf16, #tpu.memory_space<vmem>>, %arg7: memref<32x32xbf16, #tpu.memory_space<vmem>>, %arg8: memref<32x1xf32, #tpu.memory_space<vmem>>, %arg9: memref<32x32xbf16, #tpu.memory_space<vmem>>, %arg10: memref<32x1xf32, #tpu.memory_space<vmem>>, %arg11: memref<2x32xbf16, #tpu.memory_space<vmem>>, %arg12: memref<2x1xf32, #tpu.memory_space<vmem>>, %arg13: memref<32x32xbf16, #tpu.memory_space<vmem>>, %arg14: memref<32x1xf32, #tpu.memory_space<vmem>>, %arg15: memref<32x32xbf16, #tpu.memory_space<vmem>>, %arg16: memref<32x1xf32, #tpu.memory_space<vmem>>, %arg17: memref<2x32xbf16, #tpu.memory_space<vmem>>, %arg18: memref<2x1xf32, #tpu.memory_space<vmem>>, %arg19: memref<1x1x3x8xf32, #tpu.memory_space<vmem>>) attributes {dimension_semantics = [#tpu.dimension_semantics<parallel>, #tpu.dimension_semantics<parallel>], iteration_bounds = array<i64: 2, 1>, scalar_prefetch = 1 : i64, scratch_operands = 0 : i64, tpu.core_type = #tpu.core_type<tc>, window_params = [{transform_indices = @transform_0, window_bounds = array<i64: 1, 1, 32, 8>}, {transform_indices = @transform_1, window_bounds = array<i64: 1, 1, 32, 64>}, {transform_indices = @transform_2, window_bounds = array<i64: 1, 1, 3, 2, 8>}, {transform_indices = @transform_3, window_bounds = array<i64: 1, 1, 3, 2, 64>}, {pipeline_mode = #tpu.pipeline_mode<synchronous>, transform_indices = @transform_4, window_bounds = array<i64: 32, 32>}, {pipeline_mode = #tpu.pipeline_mode<synchronous>, transform_indices = @transform_5, window_bounds = array<i64: 32, 1>}, {pipeline_mode = #tpu.pipeline_mode<synchronous>, transform_indices = @transform_6, window_bounds = array<i64: 32, 32>}, {pipeline_mode = #tpu.pipeline_mode<synchronous>, transform_indices = @transform_7, window_bounds = array<i64: 32, 1>}, {pipeline_mode = #tpu.pipeline_mode<synchronous>, transform_indices = @transform_8, window_bounds = array<i64: 2, 32>}, {pipeline_mode = #tpu.pipeline_mode<synchronous>, transform_indices = @transform_9, window_bounds = array<i64: 2, 1>}, {pipeline_mode = #tpu.pipeline_mode<synchronous>, transform_indices = @transform_10, window_bounds = array<i64: 32, 32>}, {pipeline_mode = #tpu.pipeline_mode<synchronous>, transform_indices = @transform_11, window_bounds = array<i64: 32, 1>}, {pipeline_mode = #tpu.pipeline_mode<synchronous>, transform_indices = @transform_12, window_bounds = array<i64: 32, 32>}, {pipeline_mode = #tpu.pipeline_mode<synchronous>, transform_indices = @transform_13, window_bounds = array<i64: 32, 1>}, {pipeline_mode = #tpu.pipeline_mode<synchronous>, transform_indices = @transform_14, window_bounds = array<i64: 2, 32>}, {pipeline_mode = #tpu.pipeline_mode<synchronous>, transform_indices = @transform_15, window_bounds = array<i64: 2, 1>}, {transform_indices = @transform_16, window_bounds = array<i64: 1, 1, 3, 8>}]} {
    %0 = arith.index_cast %arg0 : i32 to index
    %1 = memref.load %arg2[%0] : memref<2xf32, #tpu.memory_space<smem>>
    %c0 = arith.constant 0 : index
    %c0_0 = arith.constant 0 : index
    %c0_1 = arith.constant 0 : index
    %c0_2 = arith.constant 0 : index
    %2 = vector.load %arg3[%c0, %c0_0, %c0_1, %c0_2] : memref<1x1x32x8xbf16, #tpu.memory_space<vmem>>, vector<1x1x32x8xbf16>
    %3 = vector.shape_cast %2 : vector<1x1x32x8xbf16> to vector<32x8xbf16>
    %c0_3 = arith.constant 0 : index
    %c0_4 = arith.constant 0 : index
    %4 = vector.load %arg7[%c0_3, %c0_4] : memref<32x32xbf16, #tpu.memory_space<vmem>>, vector<32x32xbf16>
    %c0_5 = arith.constant 0 : index
    %c0_6 = arith.constant 0 : index
    %5 = vector.load %arg8[%c0_5, %c0_6] : memref<32x1xf32, #tpu.memory_space<vmem>>, vector<32x1xf32>
    %c0_7 = arith.constant 0 : index
    %c0_8 = arith.constant 0 : index
    %6 = vector.load %arg9[%c0_7, %c0_8] : memref<32x32xbf16, #tpu.memory_space<vmem>>, vector<32x32xbf16>
    %c0_9 = arith.constant 0 : index
    %c0_10 = arith.constant 0 : index
    %7 = vector.load %arg10[%c0_9, %c0_10] : memref<32x1xf32, #tpu.memory_space<vmem>>, vector<32x1xf32>
    %c0_11 = arith.constant 0 : index
    %c0_12 = arith.constant 0 : index
    %8 = vector.load %arg11[%c0_11, %c0_12] : memref<2x32xbf16, #tpu.memory_space<vmem>>, vector<2x32xbf16>
    %c0_13 = arith.constant 0 : index
    %c0_14 = arith.constant 0 : index
    %9 = vector.load %arg12[%c0_13, %c0_14] : memref<2x1xf32, #tpu.memory_space<vmem>>, vector<2x1xf32>
    %cst = arith.constant dense<0.000000e+00> : vector<32x8xf32>
    %10 = tpu.matmul %4, %3, %cst {dimension_numbers = #tpu.dot_dimension_numbers<[1], [0], [0], [1], [0, 0, 1, 1], [], []>} : vector<32x32xbf16>, vector<32x8xbf16>, vector<32x8xf32> -> vector<32x8xf32>
    %11 = vector.broadcast %5 : vector<32x1xf32> to vector<32x8xf32>
    %12 = arith.addf %10, %11 : vector<32x8xf32>
    %cst_15 = arith.constant 0.000000e+00 : f32
    %13 = vector.broadcast %cst_15 : f32 to vector<32x8xf32>
    %14 = arith.maximumf %12, %13 : vector<32x8xf32>
    %15 = arith.truncf %14 : vector<32x8xf32> to vector<32x8xbf16>
    %cst_16 = arith.constant dense<0.000000e+00> : vector<32x8xf32>
    %16 = tpu.matmul %6, %15, %cst_16 {dimension_numbers = #tpu.dot_dimension_numbers<[1], [0], [0], [1], [0, 0, 1, 1], [], []>} : vector<32x32xbf16>, vector<32x8xbf16>, vector<32x8xf32> -> vector<32x8xf32>
    %17 = vector.broadcast %7 : vector<32x1xf32> to vector<32x8xf32>
    %18 = arith.addf %16, %17 : vector<32x8xf32>
    %cst_17 = arith.constant 0.000000e+00 : f32
    %19 = vector.broadcast %cst_17 : f32 to vector<32x8xf32>
    %20 = arith.maximumf %18, %19 : vector<32x8xf32>
    %21 = arith.truncf %20 : vector<32x8xf32> to vector<32x8xbf16>
    %cst_18 = arith.constant dense<0.000000e+00> : vector<2x8xf32>
    %22 = tpu.matmul %8, %21, %cst_18 {dimension_numbers = #tpu.dot_dimension_numbers<[1], [0], [0], [1], [0, 0, 1, 1], [], []>} : vector<2x32xbf16>, vector<32x8xbf16>, vector<2x8xf32> -> vector<2x8xf32>
    %23 = vector.broadcast %9 : vector<2x1xf32> to vector<2x8xf32>
    %24 = arith.addf %22, %23 : vector<2x8xf32>
    %c0_19 = arith.constant 0 : index
    %c0_20 = arith.constant 0 : index
    %c0_21 = arith.constant 0 : index
    %c0_22 = arith.constant 0 : index
    %25 = vector.load %arg4[%c0_19, %c0_20, %c0_21, %c0_22] : memref<1x1x32x64xbf16, #tpu.memory_space<vmem>>, vector<1x1x32x64xbf16>
    %26 = vector.shape_cast %25 : vector<1x1x32x64xbf16> to vector<32x64xbf16>
    %c0_23 = arith.constant 0 : index
    %c0_24 = arith.constant 0 : index
    %27 = vector.load %arg13[%c0_23, %c0_24] : memref<32x32xbf16, #tpu.memory_space<vmem>>, vector<32x32xbf16>
    %c0_25 = arith.constant 0 : index
    %c0_26 = arith.constant 0 : index
    %28 = vector.load %arg14[%c0_25, %c0_26] : memref<32x1xf32, #tpu.memory_space<vmem>>, vector<32x1xf32>
    %c0_27 = arith.constant 0 : index
    %c0_28 = arith.constant 0 : index
    %29 = vector.load %arg15[%c0_27, %c0_28] : memref<32x32xbf16, #tpu.memory_space<vmem>>, vector<32x32xbf16>
    %c0_29 = arith.constant 0 : index
    %c0_30 = arith.constant 0 : index
    %30 = vector.load %arg16[%c0_29, %c0_30] : memref<32x1xf32, #tpu.memory_space<vmem>>, vector<32x1xf32>
    %c0_31 = arith.constant 0 : index
    %c0_32 = arith.constant 0 : index
    %31 = vector.load %arg17[%c0_31, %c0_32] : memref<2x32xbf16, #tpu.memory_space<vmem>>, vector<2x32xbf16>
    %c0_33 = arith.constant 0 : index
    %c0_34 = arith.constant 0 : index
    %32 = vector.load %arg18[%c0_33, %c0_34] : memref<2x1xf32, #tpu.memory_space<vmem>>, vector<2x1xf32>
    %cst_35 = arith.constant dense<0.000000e+00> : vector<32x64xf32>
    %33 = tpu.matmul %27, %26, %cst_35 {dimension_numbers = #tpu.dot_dimension_numbers<[1], [0], [0], [1], [0, 0, 1, 1], [], []>} : vector<32x32xbf16>, vector<32x64xbf16>, vector<32x64xf32> -> vector<32x64xf32>
    %34 = vector.broadcast %28 : vector<32x1xf32> to vector<32x64xf32>
    %35 = arith.addf %33, %34 : vector<32x64xf32>
    %cst_36 = arith.constant 0.000000e+00 : f32
    %36 = vector.broadcast %cst_36 : f32 to vector<32x64xf32>
    %37 = arith.maximumf %35, %36 : vector<32x64xf32>
    %38 = arith.truncf %37 : vector<32x64xf32> to vector<32x64xbf16>
    %cst_37 = arith.constant dense<0.000000e+00> : vector<32x64xf32>
    %39 = tpu.matmul %29, %38, %cst_37 {dimension_numbers = #tpu.dot_dimension_numbers<[1], [0], [0], [1], [0, 0, 1, 1], [], []>} : vector<32x32xbf16>, vector<32x64xbf16>, vector<32x64xf32> -> vector<32x64xf32>
    %40 = vector.broadcast %30 : vector<32x1xf32> to vector<32x64xf32>
    %41 = arith.addf %39, %40 : vector<32x64xf32>
    %cst_38 = arith.constant 0.000000e+00 : f32
    %42 = vector.broadcast %cst_38 : f32 to vector<32x64xf32>
    %43 = arith.maximumf %41, %42 : vector<32x64xf32>
    %44 = arith.truncf %43 : vector<32x64xf32> to vector<32x64xbf16>
    %cst_39 = arith.constant dense<0.000000e+00> : vector<2x64xf32>
    %45 = tpu.matmul %31, %44, %cst_39 {dimension_numbers = #tpu.dot_dimension_numbers<[1], [0], [0], [1], [0, 0, 1, 1], [], []>} : vector<2x32xbf16>, vector<32x64xbf16>, vector<2x64xf32> -> vector<2x64xf32>
    %46 = vector.broadcast %32 : vector<2x1xf32> to vector<2x64xf32>
    %47 = arith.addf %45, %46 : vector<2x64xf32>
    %c0_40 = arith.constant 0 : index
    %c0_41 = arith.constant 0 : index
    %c0_42 = arith.constant 0 : index
    %c0_43 = arith.constant 0 : index
    %c0_44 = arith.constant 0 : index
    %48 = vector.load %arg5[%c0_40, %c0_41, %c0_42, %c0_43, %c0_44] : memref<1x1x3x2x8xbf16, #tpu.memory_space<vmem>>, vector<1x1x1x2x8xbf16>
    %49 = vector.shape_cast %48 : vector<1x1x1x2x8xbf16> to vector<2x8xbf16>
    %50 = arith.extf %49 : vector<2x8xbf16> to vector<2x8xf32>
    %c0_45 = arith.constant 0 : index
    %c0_46 = arith.constant 0 : index
    %c0_47 = arith.constant 0 : index
    %c0_48 = arith.constant 0 : index
    %c0_49 = arith.constant 0 : index
    %51 = vector.load %arg6[%c0_45, %c0_46, %c0_47, %c0_48, %c0_49] : memref<1x1x3x2x64xbf16, #tpu.memory_space<vmem>>, vector<1x1x1x2x64xbf16>
    %52 = vector.shape_cast %51 : vector<1x1x1x2x64xbf16> to vector<2x64xbf16>
    %53 = arith.extf %52 : vector<2x64xbf16> to vector<2x64xf32>
    %54 = arith.mulf %24, %50 : vector<2x8xf32>
    %cst_50 = arith.constant dense<0.000000e+00> : vector<8xf32>
    %55 = vector.multi_reduction <add>, %54, %cst_50 [0] : vector<2x8xf32> to vector<8xf32>
    %56 = vector.shape_cast %55 : vector<8xf32> to vector<1x8xf32>
    %57 = arith.mulf %47, %53 : vector<2x64xf32>
    %cst_51 = arith.constant dense<0.000000e+00> : vector<64xf32>
    %58 = vector.multi_reduction <add>, %57, %cst_51 [0] : vector<2x64xf32> to vector<64xf32>
    %59 = vector.shape_cast %58 : vector<64xf32> to vector<1x64xf32>
    %60 = vector.extract_strided_slice %59 {offsets = [0, 0], sizes = [1, 8], strides = [1, 1]} : vector<1x64xf32> to vector<1x8xf32>
    %61 = vector.extract_strided_slice %59 {offsets = [0, 8], sizes = [1, 8], strides = [1, 1]} : vector<1x64xf32> to vector<1x8xf32>
    %62 = vector.extract_strided_slice %59 {offsets = [0, 16], sizes = [1, 8], strides = [1, 1]} : vector<1x64xf32> to vector<1x8xf32>
    %63 = vector.extract_strided_slice %59 {offsets = [0, 24], sizes = [1, 8], strides = [1, 1]} : vector<1x64xf32> to vector<1x8xf32>
    %64 = vector.extract_strided_slice %59 {offsets = [0, 32], sizes = [1, 8], strides = [1, 1]} : vector<1x64xf32> to vector<1x8xf32>
    %65 = vector.extract_strided_slice %59 {offsets = [0, 40], sizes = [1, 8], strides = [1, 1]} : vector<1x64xf32> to vector<1x8xf32>
    %66 = vector.extract_strided_slice %59 {offsets = [0, 48], sizes = [1, 8], strides = [1, 1]} : vector<1x64xf32> to vector<1x8xf32>
    %67 = vector.extract_strided_slice %59 {offsets = [0, 56], sizes = [1, 8], strides = [1, 1]} : vector<1x64xf32> to vector<1x8xf32>
    %68 = arith.addf %60, %61 : vector<1x8xf32>
    %69 = arith.addf %62, %63 : vector<1x8xf32>
    %70 = arith.addf %64, %65 : vector<1x8xf32>
    %71 = arith.addf %66, %67 : vector<1x8xf32>
    %72 = arith.addf %68, %69 : vector<1x8xf32>
    %73 = arith.addf %70, %71 : vector<1x8xf32>
    %74 = arith.addf %72, %73 : vector<1x8xf32>
    %75 = vector.broadcast %1 : f32 to vector<1x8xf32>
    %76 = arith.mulf %74, %75 : vector<1x8xf32>
    %77 = arith.addf %56, %76 : vector<1x8xf32>
    %78 = vector.broadcast %1 : f32 to vector<1x8xf32>
    %79 = arith.mulf %77, %78 : vector<1x8xf32>
    %c0_52 = arith.constant 0 : index
    %c0_53 = arith.constant 0 : index
    %c0_54 = arith.constant 0 : index
    %c0_55 = arith.constant 0 : index
    %80 = vector.load %arg19[%c0_52, %c0_53, %c0_54, %c0_55] : memref<1x1x3x8xf32, #tpu.memory_space<vmem>>, vector<1x1x1x8xf32>
    %81 = vector.shape_cast %80 : vector<1x1x1x8xf32> to vector<1x8xf32>
    %82 = vector.shape_cast %79 : vector<1x8xf32> to vector<1x1x1x8xf32>
    tpu.vector_store %arg19[%c0_52, %c0_53, %c0_54, %c0_55], %82 {strides = array<i32>} : memref<1x1x3x8xf32, #tpu.memory_space<vmem>>, vector<1x1x1x8xf32>,
    %c0_56 = arith.constant 0 : index
    %c0_57 = arith.constant 0 : index
    %c1 = arith.constant 1 : index
    %c0_58 = arith.constant 0 : index
    %c0_59 = arith.constant 0 : index
    %83 = vector.load %arg5[%c0_56, %c0_57, %c1, %c0_58, %c0_59] : memref<1x1x3x2x8xbf16, #tpu.memory_space<vmem>>, vector<1x1x1x2x8xbf16>
    %84 = vector.shape_cast %83 : vector<1x1x1x2x8xbf16> to vector<2x8xbf16>
    %85 = arith.extf %84 : vector<2x8xbf16> to vector<2x8xf32>
    %c0_60 = arith.constant 0 : index
    %c0_61 = arith.constant 0 : index
    %c1_62 = arith.constant 1 : index
    %c0_63 = arith.constant 0 : index
    %c0_64 = arith.constant 0 : index
    %86 = vector.load %arg6[%c0_60, %c0_61, %c1_62, %c0_63, %c0_64] : memref<1x1x3x2x64xbf16, #tpu.memory_space<vmem>>, vector<1x1x1x2x64xbf16>
    %87 = vector.shape_cast %86 : vector<1x1x1x2x64xbf16> to vector<2x64xbf16>
    %88 = arith.extf %87 : vector<2x64xbf16> to vector<2x64xf32>
    %89 = arith.mulf %24, %85 : vector<2x8xf32>
    %cst_65 = arith.constant dense<0.000000e+00> : vector<8xf32>
    %90 = vector.multi_reduction <add>, %89, %cst_65 [0] : vector<2x8xf32> to vector<8xf32>
    %91 = vector.shape_cast %90 : vector<8xf32> to vector<1x8xf32>
    %92 = arith.mulf %47, %88 : vector<2x64xf32>
    %cst_66 = arith.constant dense<0.000000e+00> : vector<64xf32>
    %93 = vector.multi_reduction <add>, %92, %cst_66 [0] : vector<2x64xf32> to vector<64xf32>
    %94 = vector.shape_cast %93 : vector<64xf32> to vector<1x64xf32>
    %95 = vector.extract_strided_slice %94 {offsets = [0, 0], sizes = [1, 8], strides = [1, 1]} : vector<1x64xf32> to vector<1x8xf32>
    %96 = vector.extract_strided_slice %94 {offsets = [0, 8], sizes = [1, 8], strides = [1, 1]} : vector<1x64xf32> to vector<1x8xf32>
    %97 = vector.extract_strided_slice %94 {offsets = [0, 16], sizes = [1, 8], strides = [1, 1]} : vector<1x64xf32> to vector<1x8xf32>
    %98 = vector.extract_strided_slice %94 {offsets = [0, 24], sizes = [1, 8], strides = [1, 1]} : vector<1x64xf32> to vector<1x8xf32>
    %99 = vector.extract_strided_slice %94 {offsets = [0, 32], sizes = [1, 8], strides = [1, 1]} : vector<1x64xf32> to vector<1x8xf32>
    %100 = vector.extract_strided_slice %94 {offsets = [0, 40], sizes = [1, 8], strides = [1, 1]} : vector<1x64xf32> to vector<1x8xf32>
    %101 = vector.extract_strided_slice %94 {offsets = [0, 48], sizes = [1, 8], strides = [1, 1]} : vector<1x64xf32> to vector<1x8xf32>
    %102 = vector.extract_strided_slice %94 {offsets = [0, 56], sizes = [1, 8], strides = [1, 1]} : vector<1x64xf32> to vector<1x8xf32>
    %103 = arith.addf %95, %96 : vector<1x8xf32>
    %104 = arith.addf %97, %98 : vector<1x8xf32>
    %105 = arith.addf %99, %100 : vector<1x8xf32>
    %106 = arith.addf %101, %102 : vector<1x8xf32>
    %107 = arith.addf %103, %104 : vector<1x8xf32>
    %108 = arith.addf %105, %106 : vector<1x8xf32>
    %109 = arith.addf %107, %108 : vector<1x8xf32>
    %110 = vector.broadcast %1 : f32 to vector<1x8xf32>
    %111 = arith.mulf %109, %110 : vector<1x8xf32>
    %112 = arith.addf %91, %111 : vector<1x8xf32>
    %113 = vector.broadcast %1 : f32 to vector<1x8xf32>
    %114 = arith.mulf %112, %113 : vector<1x8xf32>
    %c0_67 = arith.constant 0 : index
    %c0_68 = arith.constant 0 : index
    %c1_69 = arith.constant 1 : index
    %c0_70 = arith.constant 0 : index
    %115 = vector.load %arg19[%c0_67, %c0_68, %c1_69, %c0_70] : memref<1x1x3x8xf32, #tpu.memory_space<vmem>>, vector<1x1x1x8xf32>
    %116 = vector.shape_cast %115 : vector<1x1x1x8xf32> to vector<1x8xf32>
    %117 = vector.shape_cast %114 : vector<1x8xf32> to vector<1x1x1x8xf32>
    tpu.vector_store %arg19[%c0_67, %c0_68, %c1_69, %c0_70], %117 {strides = array<i32>} : memref<1x1x3x8xf32, #tpu.memory_space<vmem>>, vector<1x1x1x8xf32>,
    %c0_71 = arith.constant 0 : index
    %c0_72 = arith.constant 0 : index
    %c2 = arith.constant 2 : index
    %c0_73 = arith.constant 0 : index
    %c0_74 = arith.constant 0 : index
    %118 = vector.load %arg5[%c0_71, %c0_72, %c2, %c0_73, %c0_74] : memref<1x1x3x2x8xbf16, #tpu.memory_space<vmem>>, vector<1x1x1x2x8xbf16>
    %119 = vector.shape_cast %118 : vector<1x1x1x2x8xbf16> to vector<2x8xbf16>
    %120 = arith.extf %119 : vector<2x8xbf16> to vector<2x8xf32>
    %c0_75 = arith.constant 0 : index
    %c0_76 = arith.constant 0 : index
    %c2_77 = arith.constant 2 : index
    %c0_78 = arith.constant 0 : index
    %c0_79 = arith.constant 0 : index
    %121 = vector.load %arg6[%c0_75, %c0_76, %c2_77, %c0_78, %c0_79] : memref<1x1x3x2x64xbf16, #tpu.memory_space<vmem>>, vector<1x1x1x2x64xbf16>
    %122 = vector.shape_cast %121 : vector<1x1x1x2x64xbf16> to vector<2x64xbf16>
    %123 = arith.extf %122 : vector<2x64xbf16> to vector<2x64xf32>
    %124 = arith.mulf %24, %120 : vector<2x8xf32>
    %cst_80 = arith.constant dense<0.000000e+00> : vector<8xf32>
    %125 = vector.multi_reduction <add>, %124, %cst_80 [0] : vector<2x8xf32> to vector<8xf32>
    %126 = vector.shape_cast %125 : vector<8xf32> to vector<1x8xf32>
    %127 = arith.mulf %47, %123 : vector<2x64xf32>
    %cst_81 = arith.constant dense<0.000000e+00> : vector<64xf32>
    %128 = vector.multi_reduction <add>, %127, %cst_81 [0] : vector<2x64xf32> to vector<64xf32>
    %129 = vector.shape_cast %128 : vector<64xf32> to vector<1x64xf32>
    %130 = vector.extract_strided_slice %129 {offsets = [0, 0], sizes = [1, 8], strides = [1, 1]} : vector<1x64xf32> to vector<1x8xf32>
    %131 = vector.extract_strided_slice %129 {offsets = [0, 8], sizes = [1, 8], strides = [1, 1]} : vector<1x64xf32> to vector<1x8xf32>
    %132 = vector.extract_strided_slice %129 {offsets = [0, 16], sizes = [1, 8], strides = [1, 1]} : vector<1x64xf32> to vector<1x8xf32>
    %133 = vector.extract_strided_slice %129 {offsets = [0, 24], sizes = [1, 8], strides = [1, 1]} : vector<1x64xf32> to vector<1x8xf32>
    %134 = vector.extract_strided_slice %129 {offsets = [0, 32], sizes = [1, 8], strides = [1, 1]} : vector<1x64xf32> to vector<1x8xf32>
    %135 = vector.extract_strided_slice %129 {offsets = [0, 40], sizes = [1, 8], strides = [1, 1]} : vector<1x64xf32> to vector<1x8xf32>
    %136 = vector.extract_strided_slice %129 {offsets = [0, 48], sizes = [1, 8], strides = [1, 1]} : vector<1x64xf32> to vector<1x8xf32>
    %137 = vector.extract_strided_slice %129 {offsets = [0, 56], sizes = [1, 8], strides = [1, 1]} : vector<1x64xf32> to vector<1x8xf32>
    %138 = arith.addf %130, %131 : vector<1x8xf32>
    %139 = arith.addf %132, %133 : vector<1x8xf32>
    %140 = arith.addf %134, %135 : vector<1x8xf32>
    %141 = arith.addf %136, %137 : vector<1x8xf32>
    %142 = arith.addf %138, %139 : vector<1x8xf32>
    %143 = arith.addf %140, %141 : vector<1x8xf32>
    %144 = arith.addf %142, %143 : vector<1x8xf32>
    %145 = vector.broadcast %1 : f32 to vector<1x8xf32>
    %146 = arith.mulf %144, %145 : vector<1x8xf32>
    %147 = arith.addf %126, %146 : vector<1x8xf32>
    %148 = vector.broadcast %1 : f32 to vector<1x8xf32>
    %149 = arith.mulf %147, %148 : vector<1x8xf32>
    %c0_82 = arith.constant 0 : index
    %c0_83 = arith.constant 0 : index
    %c2_84 = arith.constant 2 : index
    %c0_85 = arith.constant 0 : index
    %150 = vector.load %arg19[%c0_82, %c0_83, %c2_84, %c0_85] : memref<1x1x3x8xf32, #tpu.memory_space<vmem>>, vector<1x1x1x8xf32>
    %151 = vector.shape_cast %150 : vector<1x1x1x8xf32> to vector<1x8xf32>
    %152 = vector.shape_cast %149 : vector<1x8xf32> to vector<1x1x1x8xf32>
    tpu.vector_store %arg19[%c0_82, %c0_83, %c2_84, %c0_85], %152 {strides = array<i32>} : memref<1x1x3x8xf32, #tpu.memory_space<vmem>>, vector<1x1x1x8xf32>,
    return
  }
  func.func @transform_0(%arg0: i32, %arg1: i32, %arg2: memref<2xf32, #tpu.memory_space<smem>>) -> (i32, i32, i32, i32) {
    %c0_i32 = arith.constant 0 : i32
    %c0_i32_0 = arith.constant 0 : i32
    %c0_i32_1 = arith.constant 0 : i32
    return %arg0, %arg1, %c0_i32, %c0_i32_0 : i32, i32, i32, i32
  }
  func.func @transform_1(%arg0: i32, %arg1: i32, %arg2: memref<2xf32, #tpu.memory_space<smem>>) -> (i32, i32, i32, i32) {
    %c0_i32 = arith.constant 0 : i32
    %c0_i32_0 = arith.constant 0 : i32
    %c0_i32_1 = arith.constant 0 : i32
    return %arg0, %arg1, %c0_i32, %c0_i32_0 : i32, i32, i32, i32
  }
  func.func @transform_2(%arg0: i32, %arg1: i32, %arg2: memref<2xf32, #tpu.memory_space<smem>>) -> (i32, i32, i32, i32, i32) {
    %c0_i32 = arith.constant 0 : i32
    %c0_i32_0 = arith.constant 0 : i32
    %c0_i32_1 = arith.constant 0 : i32
    %c0_i32_2 = arith.constant 0 : i32
    return %arg0, %arg1, %c0_i32, %c0_i32_0, %c0_i32_1 : i32, i32, i32, i32, i32
  }
  func.func @transform_3(%arg0: i32, %arg1: i32, %arg2: memref<2xf32, #tpu.memory_space<smem>>) -> (i32, i32, i32, i32, i32) {
    %c0_i32 = arith.constant 0 : i32
    %c0_i32_0 = arith.constant 0 : i32
    %c0_i32_1 = arith.constant 0 : i32
    %c0_i32_2 = arith.constant 0 : i32
    return %arg0, %arg1, %c0_i32, %c0_i32_0, %c0_i32_1 : i32, i32, i32, i32, i32
  }
  func.func @transform_4(%arg0: i32, %arg1: i32, %arg2: memref<2xf32, #tpu.memory_space<smem>>) -> (i32, i32) {
    %c0_i32 = arith.constant 0 : i32
    %c0_i32_0 = arith.constant 0 : i32
    %c0_i32_1 = arith.constant 0 : i32
    return %c0_i32, %c0_i32_0 : i32, i32
  }
  func.func @transform_5(%arg0: i32, %arg1: i32, %arg2: memref<2xf32, #tpu.memory_space<smem>>) -> (i32, i32) {
    %c0_i32 = arith.constant 0 : i32
    %c0_i32_0 = arith.constant 0 : i32
    %c0_i32_1 = arith.constant 0 : i32
    return %c0_i32, %c0_i32_0 : i32, i32
  }
  func.func @transform_6(%arg0: i32, %arg1: i32, %arg2: memref<2xf32, #tpu.memory_space<smem>>) -> (i32, i32) {
    %c0_i32 = arith.constant 0 : i32
    %c0_i32_0 = arith.constant 0 : i32
    %c0_i32_1 = arith.constant 0 : i32
    return %c0_i32, %c0_i32_0 : i32, i32
  }
  func.func @transform_7(%arg0: i32, %arg1: i32, %arg2: memref<2xf32, #tpu.memory_space<smem>>) -> (i32, i32) {
    %c0_i32 = arith.constant 0 : i32
    %c0_i32_0 = arith.constant 0 : i32
    %c0_i32_1 = arith.constant 0 : i32
    return %c0_i32, %c0_i32_0 : i32, i32
  }
  func.func @transform_8(%arg0: i32, %arg1: i32, %arg2: memref<2xf32, #tpu.memory_space<smem>>) -> (i32, i32) {
    %c0_i32 = arith.constant 0 : i32
    %c0_i32_0 = arith.constant 0 : i32
    %c0_i32_1 = arith.constant 0 : i32
    return %c0_i32, %c0_i32_0 : i32, i32
  }
  func.func @transform_9(%arg0: i32, %arg1: i32, %arg2: memref<2xf32, #tpu.memory_space<smem>>) -> (i32, i32) {
    %c0_i32 = arith.constant 0 : i32
    %c0_i32_0 = arith.constant 0 : i32
    %c0_i32_1 = arith.constant 0 : i32
    return %c0_i32, %c0_i32_0 : i32, i32
  }
  func.func @transform_10(%arg0: i32, %arg1: i32, %arg2: memref<2xf32, #tpu.memory_space<smem>>) -> (i32, i32) {
    %c0_i32 = arith.constant 0 : i32
    %c0_i32_0 = arith.constant 0 : i32
    %c0_i32_1 = arith.constant 0 : i32
    return %c0_i32, %c0_i32_0 : i32, i32
  }
  func.func @transform_11(%arg0: i32, %arg1: i32, %arg2: memref<2xf32, #tpu.memory_space<smem>>) -> (i32, i32) {
    %c0_i32 = arith.constant 0 : i32
    %c0_i32_0 = arith.constant 0 : i32
    %c0_i32_1 = arith.constant 0 : i32
    return %c0_i32, %c0_i32_0 : i32, i32
  }
  func.func @transform_12(%arg0: i32, %arg1: i32, %arg2: memref<2xf32, #tpu.memory_space<smem>>) -> (i32, i32) {
    %c0_i32 = arith.constant 0 : i32
    %c0_i32_0 = arith.constant 0 : i32
    %c0_i32_1 = arith.constant 0 : i32
    return %c0_i32, %c0_i32_0 : i32, i32
  }
  func.func @transform_13(%arg0: i32, %arg1: i32, %arg2: memref<2xf32, #tpu.memory_space<smem>>) -> (i32, i32) {
    %c0_i32 = arith.constant 0 : i32
    %c0_i32_0 = arith.constant 0 : i32
    %c0_i32_1 = arith.constant 0 : i32
    return %c0_i32, %c0_i32_0 : i32, i32
  }
  func.func @transform_14(%arg0: i32, %arg1: i32, %arg2: memref<2xf32, #tpu.memory_space<smem>>) -> (i32, i32) {
    %c0_i32 = arith.constant 0 : i32
    %c0_i32_0 = arith.constant 0 : i32
    %c0_i32_1 = arith.constant 0 : i32
    return %c0_i32, %c0_i32_0 : i32, i32
  }
  func.func @transform_15(%arg0: i32, %arg1: i32, %arg2: memref<2xf32, #tpu.memory_space<smem>>) -> (i32, i32) {
    %c0_i32 = arith.constant 0 : i32
    %c0_i32_0 = arith.constant 0 : i32
    %c0_i32_1 = arith.constant 0 : i32
    return %c0_i32, %c0_i32_0 : i32, i32
  }
  func.func @transform_16(%arg0: i32, %arg1: i32, %arg2: memref<2xf32, #tpu.memory_space<smem>>) -> (i32, i32, i32, i32) {
    %c0_i32 = arith.constant 0 : i32
    %c0_i32_0 = arith.constant 0 : i32
    %c0_i32_1 = arith.constant 0 : i32
    return %arg0, %arg1, %c0_i32, %c0_i32_0 : i32, i32, i32, i32
  }
}

</mosaic_0001>

<llo_original>
// kernel: tpu_custom_call.1
$region0: #{tpu_custom_call.1}
  #allocation0 [shape = 'u32[]', space=smem, size = 0x4, offset = 0x4, fixed_abs, tag = 'smem constant byte address 0x4 - core index']
  #allocation1 [shape = 'u32[144,128]{1,0:T(1,128)}', space=vmem, size = 0x12000, scoped, tag = 'internal scratch']
  #allocation2 [shape = 's32[1]{0}', space=sflag, size = 0x4, scoped, tag = 'scoped memory for tpu_custom_call.1']
  #allocation3 [shape = 'u8[512]{0}', space=smem, size = 0x200, scoped, tag = 'prefetched SMEM operand 0']
  %s0 = inlined_call_operand.vmem [shape: f32[2], index: 0, kind: input, shape index: {}]
  %s1 = inlined_call_operand.vmem [shape: bf16[2,1,32,8], index: 1, kind: input, shape index: {}]
  %s2 = inlined_call_operand.vmem [shape: bf16[2,1,32,64], index: 2, kind: input, shape index: {}]
  %s3 = inlined_call_operand.vmem [shape: bf16[2,1,3,2,8], index: 3, kind: input, shape index: {}]
  %s4 = inlined_call_operand.vmem [shape: bf16[2,1,3,2,64], index: 4, kind: input, shape index: {}]
  %s5 = inlined_call_operand.vmem [shape: bf16[32,32], index: 5, kind: input, shape index: {}]
  %s6 = inlined_call_operand.vmem [shape: f32[32,1], index: 6, kind: input, shape index: {}]
  %s7 = inlined_call_operand.vmem [shape: bf16[32,32], index: 7, kind: input, shape index: {}]
  %s8 = inlined_call_operand.vmem [shape: f32[32,1], index: 8, kind: input, shape index: {}]
  %s9 = inlined_call_operand.vmem [shape: bf16[2,32], index: 9, kind: input, shape index: {}]
  %s10 = inlined_call_operand.vmem [shape: f32[2,1], index: 10, kind: input, shape index: {}]
  %s11 = inlined_call_operand.vmem [shape: bf16[32,32], index: 11, kind: input, shape index: {}]
  %s12 = inlined_call_operand.vmem [shape: f32[32,1], index: 12, kind: input, shape index: {}]
  %s13 = inlined_call_operand.vmem [shape: bf16[32,32], index: 13, kind: input, shape index: {}]
  %s14 = inlined_call_operand.vmem [shape: f32[32,1], index: 14, kind: input, shape index: {}]
  %s15 = inlined_call_operand.vmem [shape: bf16[2,32], index: 15, kind: input, shape index: {}]
  %s16 = inlined_call_operand.vmem [shape: f32[2,1], index: 16, kind: input, shape index: {}]
  %s17 = inlined_call_operand.vmem [shape: f32[2,1,3,8], index: 17, kind: output, shape index: {}]
  %s18 = sld [smem:[#allocation0]]
  $region97: #{tpu_custom_call.1} parent=0
    _
  %s20 = ssub.s32 1, %s18
  %s21 = scalar_select 0, %s20, %s18
  %s22 = sshll.u32 %s0, 4
  %s23 = int_to_ptr.vmem [resolvable:$true] %s22
  %25 = dma.vmem_to_smem %s23, 16, [#allocation3], [#allocation2]
  %26 = dma.done [#allocation2], 16
  %27 = sfence
  loop: start=0, step=1, limit=4
  $region2: #{tpu_custom_call.1} parent=0 // loop_pre_header
    _
  $region3: #{tpu_custom_call.1} parent=0 // loop_header
    %s29 = sphi 0, %s33
    %p30 = scmp.ge.s32.totalorder %s29, 4
    %s36 = sphi 0, %s48
    %s37 = sphi 0, %s44
    %s38 = sphi 0, %s36
    %s39 = sphi 0, %s37
    %s40 = sphi 0, %s38
    %s41 = sphi 0, %s39
    %s53 = sphi 0, %s55
    %s56 = sphi 0, %s53
    %s57 = sphi 0, %s56
    %s73 = sphi 0, %s57
    %s81 = sphi 0, %s83
    %s84 = sphi 0, %s81
    %s85 = sphi 0, %s84
    %s101 = sphi 0, %s85
    %s109 = sphi 0, %s111
    %s112 = sphi 0, %s109
    %s113 = sphi 0, %s112
    %s129 = sphi 0, %s113
    %s137 = sphi 0, %s139
    %s140 = sphi 0, %s137
    %s141 = sphi 0, %s140
    %s157 = sphi 0, %s141
    %s161 = sphi 0, %s161
    %s163 = sphi 0, %s161
    %s164 = sphi 0, %s163
    %s178 = sphi 0, %s164
    %s182 = sphi 0, %s182
    %s184 = sphi 0, %s182
    %s185 = sphi 0, %s184
    %s199 = sphi 0, %s185
    %s203 = sphi 0, %s203
    %s205 = sphi 0, %s203
    %s206 = sphi 0, %s205
    %s220 = sphi 0, %s206
    %s224 = sphi 0, %s224
    %s226 = sphi 0, %s224
    %s227 = sphi 0, %s226
    %s241 = sphi 0, %s227
    %s245 = sphi 0, %s245
    %s247 = sphi 0, %s245
    %s248 = sphi 0, %s247
    %s262 = sphi 0, %s248
    %s266 = sphi 0, %s266
    %s268 = sphi 0, %s266
    %s269 = sphi 0, %s268
    %s283 = sphi 0, %s269
    %s287 = sphi 0, %s287
    %s289 = sphi 0, %s287
    %s290 = sphi 0, %s289
    %s304 = sphi 0, %s290
    %s308 = sphi 0, %s308
    %s310 = sphi 0, %s308
    %s311 = sphi 0, %s310
    %s325 = sphi 0, %s311
    %s329 = sphi 0, %s329
    %s331 = sphi 0, %s329
    %s332 = sphi 0, %s331
    %s346 = sphi 0, %s332
    %s350 = sphi 0, %s350
    %s352 = sphi 0, %s350
    %s353 = sphi 0, %s352
    %s367 = sphi 0, %s353
    %s371 = sphi 0, %s371
    %s373 = sphi 0, %s371
    %s374 = sphi 0, %s373
    %s388 = sphi 0, %s374
    %s392 = sphi 0, %s392
    %s394 = sphi 0, %s392
    %s395 = sphi 0, %s394
    %s409 = sphi 0, %s395
    %s417 = sphi 0, %s419
    %s420 = sphi 0, %s417
    %s421 = sphi 0, %s420
    %s437 = sphi 0, %s421
  $region4: #{tpu_custom_call.1} parent=0 // loop_header_branch
    %32 = sbr.rel (%p30) target = $region8
  $region5: #{tpu_custom_call.1} parent=0 // loop_body
    %s34 = ssub.s32 %s29, 1
    %s35 = ssub.s32 %s29, 2
    %s42 = sadd.s32 1, %s37
    %p43 = scmp.ge.s32.totalorder %s42, 1
    %s44 = scalar_select %p43, 0, %s42
    %s45 = sadd.s32 1, %s36
    %s46 = scalar_select %p43, %s45, %s36
    %p47 = scmp.ge.s32.totalorder %s46, 2
    %s48 = scalar_select %p47, 0, %s46
    %s49 = ssub.s32 %s36, %s48
    %s50 = ssub.s32 %s37, %s44
    %s51 = sor.u32 %s49, %s50
    %p52 = scmp.eq.s32.totalorder %s51, 0
    %s54 = sadd.s32 %s53, 1
    %s55 = scalar_select %p52, %s53, %s54
    %p58 = pneg %p52
    %p59 = scmp.eq.s32.totalorder %s29, 1
    %p60 = por %p58, %p59
    %p61 = scmp.ne.s32.totalorder %s53, %s56
    %p62 = scmp.eq.s32.totalorder %s29, 0
    %p63 = por %p61, %p62
    %p64 = scmp.ne.s32.totalorder %s53, %s56
    %p65 = scmp.eq.s32.totalorder %s34, 1
    %p66 = por %p64, %p65
    %p67 = scmp.ne.s32.totalorder %s56, %s57
    %p68 = scmp.eq.s32.totalorder %s34, 0
    %p69 = por %p67, %p68
    %p70 = scmp.ne.s32.totalorder %s56, %s57
    %p71 = scmp.eq.s32.totalorder %s35, 1
    %p72 = por %p70, %p71
    %p74 = scmp.ne.s32.totalorder %s57, %s73
    %p75 = scmp.eq.s32.totalorder %s35, 0
    %p76 = por %p74, %p75
    %s77 = ssub.s32 %s36, %s48
    %s78 = ssub.s32 %s37, %s44
    %s79 = sor.u32 %s77, %s78
    %p80 = scmp.eq.s32.totalorder %s79, 0
    %s82 = sadd.s32 %s81, 1
    %s83 = scalar_select %p80, %s81, %s82
    %p86 = pneg %p80
    %p87 = scmp.eq.s32.totalorder %s29, 1
    %p88 = por %p86, %p87
    %p89 = scmp.ne.s32.totalorder %s81, %s84
    %p90 = scmp.eq.s32.totalorder %s29, 0
    %p91 = por %p89, %p90
    %p92 = scmp.ne.s32.totalorder %s81, %s84
    %p93 = scmp.eq.s32.totalorder %s34, 1
    %p94 = por %p92, %p93
    %p95 = scmp.ne.s32.totalorder %s84, %s85
    %p96 = scmp.eq.s32.totalorder %s34, 0
    %p97 = por %p95, %p96
    %p98 = scmp.ne.s32.totalorder %s84, %s85
    %p99 = scmp.eq.s32.totalorder %s35, 1
    %p100 = por %p98, %p99
    %p102 = scmp.ne.s32.totalorder %s85, %s101
    %p103 = scmp.eq.s32.totalorder %s35, 0
    %p104 = por %p102, %p103
    %s105 = ssub.s32 %s36, %s48
    %s106 = ssub.s32 %s37, %s44
    %s107 = sor.u32 %s105, %s106
    %p108 = scmp.eq.s32.totalorder %s107, 0
    %s110 = sadd.s32 %s109, 1
    %s111 = scalar_select %p108, %s109, %s110
    %p114 = pneg %p108
    %p115 = scmp.eq.s32.totalorder %s29, 1
    %p116 = por %p114, %p115
    %p117 = scmp.ne.s32.totalorder %s109, %s112
    %p118 = scmp.eq.s32.totalorder %s29, 0
    %p119 = por %p117, %p118
    %p120 = scmp.ne.s32.totalorder %s109, %s112
    %p121 = scmp.eq.s32.totalorder %s34, 1
    %p122 = por %p120, %p121
    %p123 = scmp.ne.s32.totalorder %s112, %s113
    %p124 = scmp.eq.s32.totalorder %s34, 0
    %p125 = por %p123, %p124
    %p126 = scmp.ne.s32.totalorder %s112, %s113
    %p127 = scmp.eq.s32.totalorder %s35, 1
    %p128 = por %p126, %p127
    %p130 = scmp.ne.s32.totalorder %s113, %s129
    %p131 = scmp.eq.s32.totalorder %s35, 0
    %p132 = por %p130, %p131
    %s133 = ssub.s32 %s36, %s48
    %s134 = ssub.s32 %s37, %s44
    %s135 = sor.u32 %s133, %s134
    %p136 = scmp.eq.s32.totalorder %s135, 0
    %s138 = sadd.s32 %s137, 1
    %s139 = scalar_select %p136, %s137, %s138
    %p142 = pneg %p136
    %p143 = scmp.eq.s32.totalorder %s29, 1
    %p144 = por %p142, %p143
    %p145 = scmp.ne.s32.totalorder %s137, %s140
    %p146 = scmp.eq.s32.totalorder %s29, 0
    %p147 = por %p145, %p146
    %p148 = scmp.ne.s32.totalorder %s137, %s140
    %p149 = scmp.eq.s32.totalorder %s34, 1
    %p150 = por %p148, %p149
    %p151 = scmp.ne.s32.totalorder %s140, %s141
    %p152 = scmp.eq.s32.totalorder %s34, 0
    %p153 = por %p151, %p152
    %p154 = scmp.ne.s32.totalorder %s140, %s141
    %p155 = scmp.eq.s32.totalorder %s35, 1
    %p156 = por %p154, %p155
    %p158 = scmp.ne.s32.totalorder %s141, %s157
    %p159 = scmp.eq.s32.totalorder %s35, 0
    %p160 = por %p158, %p159
    %s162 = sadd.s32 %s161, 1
    %p165 = scmp.eq.s32.totalorder %s29, 1
    %p166 = scmp.ne.s32.totalorder %s161, %s163
    %p167 = scmp.eq.s32.totalorder %s29, 0
    %p168 = por %p166, %p167
    %p169 = scmp.ne.s32.totalorder %s161, %s163
    %p170 = scmp.eq.s32.totalorder %s34, 1
    %p171 = por %p169, %p170
    %p172 = scmp.ne.s32.totalorder %s163, %s164
    %p173 = scmp.eq.s32.totalorder %s34, 0
    %p174 = por %p172, %p173
    %p175 = scmp.ne.s32.totalorder %s163, %s164
    %p176 = scmp.eq.s32.totalorder %s35, 1
    %p177 = por %p175, %p176
    %p179 = scmp.ne.s32.totalorder %s164, %s178
    %p180 = scmp.eq.s32.totalorder %s35, 0
    %p181 = por %p179, %p180
    %s183 = sadd.s32 %s182, 1
    %p186 = scmp.eq.s32.totalorder %s29, 1
    %p187 = scmp.ne.s32.totalorder %s182, %s184
    %p188 = scmp.eq.s32.totalorder %s29, 0
    %p189 = por %p187, %p188
    %p190 = scmp.ne.s32.totalorder %s182, %s184
    %p191 = scmp.eq.s32.totalorder %s34, 1
    %p192 = por %p190, %p191
    %p193 = scmp.ne.s32.totalorder %s184, %s185
    %p194 = scmp.eq.s32.totalorder %s34, 0
    %p195 = por %p193, %p194
    %p196 = scmp.ne.s32.totalorder %s184, %s185
    %p197 = scmp.eq.s32.totalorder %s35, 1
    %p198 = por %p196, %p197
    %p200 = scmp.ne.s32.totalorder %s185, %s199
    %p201 = scmp.eq.s32.totalorder %s35, 0
    %p202 = por %p200, %p201
    %s204 = sadd.s32 %s203, 1
    %p207 = scmp.eq.s32.totalorder %s29, 1
    %p208 = scmp.ne.s32.totalorder %s203, %s205
    %p209 = scmp.eq.s32.totalorder %s29, 0
    %p210 = por %p208, %p209
    %p211 = scmp.ne.s32.totalorder %s203, %s205
    %p212 = scmp.eq.s32.totalorder %s34, 1
    %p213 = por %p211, %p212
    %p214 = scmp.ne.s32.totalorder %s205, %s206
    %p215 = scmp.eq.s32.totalorder %s34, 0
    %p216 = por %p214, %p215
    %p217 = scmp.ne.s32.totalorder %s205, %s206
    %p218 = scmp.eq.s32.totalorder %s35, 1
    %p219 = por %p217, %p218
    %p221 = scmp.ne.s32.totalorder %s206, %s220
    %p222 = scmp.eq.s32.totalorder %s35, 0
    %p223 = por %p221, %p222
    %s225 = sadd.s32 %s224, 1
    %p228 = scmp.eq.s32.totalorder %s29, 1
    %p229 = scmp.ne.s32.totalorder %s224, %s226
    %p230 = scmp.eq.s32.totalorder %s29, 0
    %p231 = por %p229, %p230
    %p232 = scmp.ne.s32.totalorder %s224, %s226
    %p233 = scmp.eq.s32.totalorder %s34, 1
    %p234 = por %p232, %p233
    %p235 = scmp.ne.s32.totalorder %s226, %s227
    %p236 = scmp.eq.s32.totalorder %s34, 0
    %p237 = por %p235, %p236
    %p238 = scmp.ne.s32.totalorder %s226, %s227
    %p239 = scmp.eq.s32.totalorder %s35, 1
    %p240 = por %p238, %p239
    %p242 = scmp.ne.s32.totalorder %s227, %s241
    %p243 = scmp.eq.s32.totalorder %s35, 0
    %p244 = por %p242, %p243
    %s246 = sadd.s32 %s245, 1
    %p249 = scmp.eq.s32.totalorder %s29, 1
    %p250 = scmp.ne.s32.totalorder %s245, %s247
    %p251 = scmp.eq.s32.totalorder %s29, 0
    %p252 = por %p250, %p251
    %p253 = scmp.ne.s32.totalorder %s245, %s247
    %p254 = scmp.eq.s32.totalorder %s34, 1
    %p255 = por %p253, %p254
    %p256 = scmp.ne.s32.totalorder %s247, %s248
    %p257 = scmp.eq.s32.totalorder %s34, 0
    %p258 = por %p256, %p257
    %p259 = scmp.ne.s32.totalorder %s247, %s248
    %p260 = scmp.eq.s32.totalorder %s35, 1
    %p261 = por %p259, %p260
    %p263 = scmp.ne.s32.totalorder %s248, %s262
    %p264 = scmp.eq.s32.totalorder %s35, 0
    %p265 = por %p263, %p264
    %s267 = sadd.s32 %s266, 1
    %p270 = scmp.eq.s32.totalorder %s29, 1
    %p271 = scmp.ne.s32.totalorder %s266, %s268
    %p272 = scmp.eq.s32.totalorder %s29, 0
    %p273 = por %p271, %p272
    %p274 = scmp.ne.s32.totalorder %s266, %s268
    %p275 = scmp.eq.s32.totalorder %s34, 1
    %p276 = por %p274, %p275
    %p277 = scmp.ne.s32.totalorder %s268, %s269
    %p278 = scmp.eq.s32.totalorder %s34, 0
    %p279 = por %p277, %p278
    %p280 = scmp.ne.s32.totalorder %s268, %s269
    %p281 = scmp.eq.s32.totalorder %s35, 1
    %p282 = por %p280, %p281
    %p284 = scmp.ne.s32.totalorder %s269, %s283
    %p285 = scmp.eq.s32.totalorder %s35, 0
    %p286 = por %p284, %p285
    %s288 = sadd.s32 %s287, 1
    %p291 = scmp.eq.s32.totalorder %s29, 1
    %p292 = scmp.ne.s32.totalorder %s287, %s289
    %p293 = scmp.eq.s32.totalorder %s29, 0
    %p294 = por %p292, %p293
    %p295 = scmp.ne.s32.totalorder %s287, %s289
    %p296 = scmp.eq.s32.totalorder %s34, 1
    %p297 = por %p295, %p296
    %p298 = scmp.ne.s32.totalorder %s289, %s290
    %p299 = scmp.eq.s32.totalorder %s34, 0
    %p300 = por %p298, %p299
    %p301 = scmp.ne.s32.totalorder %s289, %s290
    %p302 = scmp.eq.s32.totalorder %s35, 1
    %p303 = por %p301, %p302
    %p305 = scmp.ne.s32.totalorder %s290, %s304
    %p306 = scmp.eq.s32.totalorder %s35, 0
    %p307 = por %p305, %p306
    %s309 = sadd.s32 %s308, 1
    %p312 = scmp.eq.s32.totalorder %s29, 1
    %p313 = scmp.ne.s32.totalorder %s308, %s310
    %p314 = scmp.eq.s32.totalorder %s29, 0
    %p315 = por %p313, %p314
    %p316 = scmp.ne.s32.totalorder %s308, %s310
    %p317 = scmp.eq.s32.totalorder %s34, 1
    %p318 = por %p316, %p317
    %p319 = scmp.ne.s32.totalorder %s310, %s311
    %p320 = scmp.eq.s32.totalorder %s34, 0
    %p321 = por %p319, %p320
    %p322 = scmp.ne.s32.totalorder %s310, %s311
    %p323 = scmp.eq.s32.totalorder %s35, 1
    %p324 = por %p322, %p323
    %p326 = scmp.ne.s32.totalorder %s311, %s325
    %p327 = scmp.eq.s32.totalorder %s35, 0
    %p328 = por %p326, %p327
    %s330 = sadd.s32 %s329, 1
    %p333 = scmp.eq.s32.totalorder %s29, 1
    %p334 = scmp.ne.s32.totalorder %s329, %s331
    %p335 = scmp.eq.s32.totalorder %s29, 0
    %p336 = por %p334, %p335
    %p337 = scmp.ne.s32.totalorder %s329, %s331
    %p338 = scmp.eq.s32.totalorder %s34, 1
    %p339 = por %p337, %p338
    %p340 = scmp.ne.s32.totalorder %s331, %s332
    %p341 = scmp.eq.s32.totalorder %s34, 0
    %p342 = por %p340, %p341
    %p343 = scmp.ne.s32.totalorder %s331, %s332
    %p344 = scmp.eq.s32.totalorder %s35, 1
    %p345 = por %p343, %p344
    %p347 = scmp.ne.s32.totalorder %s332, %s346
    %p348 = scmp.eq.s32.totalorder %s35, 0
    %p349 = por %p347, %p348
    %s351 = sadd.s32 %s350, 1
    %p354 = scmp.eq.s32.totalorder %s29, 1
    %p355 = scmp.ne.s32.totalorder %s350, %s352
    %p356 = scmp.eq.s32.totalorder %s29, 0
    %p357 = por %p355, %p356
    %p358 = scmp.ne.s32.totalorder %s350, %s352
    %p359 = scmp.eq.s32.totalorder %s34, 1
    %p360 = por %p358, %p359
    %p361 = scmp.ne.s32.totalorder %s352, %s353
    %p362 = scmp.eq.s32.totalorder %s34, 0
    %p363 = por %p361, %p362
    %p364 = scmp.ne.s32.totalorder %s352, %s353
    %p365 = scmp.eq.s32.totalorder %s35, 1
    %p366 = por %p364, %p365
    %p368 = scmp.ne.s32.totalorder %s353, %s367
    %p369 = scmp.eq.s32.totalorder %s35, 0
    %p370 = por %p368, %p369
    %s372 = sadd.s32 %s371, 1
    %p375 = scmp.eq.s32.totalorder %s29, 1
    %p376 = scmp.ne.s32.totalorder %s371, %s373
    %p377 = scmp.eq.s32.totalorder %s29, 0
    %p378 = por %p376, %p377
    %p379 = scmp.ne.s32.totalorder %s371, %s373
    %p380 = scmp.eq.s32.totalorder %s34, 1
    %p381 = por %p379, %p380
    %p382 = scmp.ne.s32.totalorder %s373, %s374
    %p383 = scmp.eq.s32.totalorder %s34, 0
    %p384 = por %p382, %p383
    %p385 = scmp.ne.s32.totalorder %s373, %s374
    %p386 = scmp.eq.s32.totalorder %s35, 1
    %p387 = por %p385, %p386
    %p389 = scmp.ne.s32.totalorder %s374, %s388
    %p390 = scmp.eq.s32.totalorder %s35, 0
    %p391 = por %p389, %p390
    %s393 = sadd.s32 %s392, 1
    %p396 = scmp.eq.s32.totalorder %s29, 1
    %p397 = scmp.ne.s32.totalorder %s392, %s394
    %p398 = scmp.eq.s32.totalorder %s29, 0
    %p399 = por %p397, %p398
    %p400 = scmp.ne.s32.totalorder %s392, %s394
    %p401 = scmp.eq.s32.totalorder %s34, 1
    %p402 = por %p400, %p401
    %p403 = scmp.ne.s32.totalorder %s394, %s395
    %p404 = scmp.eq.s32.totalorder %s34, 0
    %p405 = por %p403, %p404
    %p406 = scmp.ne.s32.totalorder %s394, %s395
    %p407 = scmp.eq.s32.totalorder %s35, 1
    %p408 = por %p406, %p407
    %p410 = scmp.ne.s32.totalorder %s395, %s409
    %p411 = scmp.eq.s32.totalorder %s35, 0
    %p412 = por %p410, %p411
    %s413 = ssub.s32 %s36, %s48
    %s414 = ssub.s32 %s37, %s44
    %s415 = sor.u32 %s413, %s414
    %p416 = scmp.eq.s32.totalorder %s415, 0
    %s418 = sadd.s32 %s417, 1
    %s419 = scalar_select %p416, %s417, %s418
    %p422 = pneg %p416
    %p423 = scmp.eq.s32.totalorder %s29, 1
    %p424 = por %p422, %p423
    %p425 = scmp.ne.s32.totalorder %s417, %s420
    %p426 = scmp.eq.s32.totalorder %s29, 0
    %p427 = por %p425, %p426
    %p428 = scmp.ne.s32.totalorder %s417, %s420
    %p429 = scmp.eq.s32.totalorder %s34, 1
    %p430 = por %p428, %p429
    %p431 = scmp.ne.s32.totalorder %s420, %s421
    %p432 = scmp.eq.s32.totalorder %s34, 0
    %p433 = por %p431, %p432
    %p434 = scmp.ne.s32.totalorder %s420, %s421
    %p435 = scmp.eq.s32.totalorder %s35, 1
    %p436 = por %p434, %p435
    %p438 = scmp.ne.s32.totalorder %s421, %s437
    %p439 = scmp.eq.s32.totalorder %s35, 0
    %p440 = por %p438, %p439
    %p441 = scmp.le.s32.totalorder 1, %s29
    %p442 = scmp.lt.s32.totalorder %s29, 3
    %p443 = pnand %p441, %p442
    %p444 = pneg %p443
    // Predicated region
    $region9: #{tpu_custom_call.1} parent=5 // pred_check
      _
    $region10: #{tpu_custom_call.1} parent=5 // pred_check_branch
      %446 = sbr.rel (%p443) target = $region12
    $region11: #{tpu_custom_call.1} parent=5 // pred_region
      %s447 = ssub.s32 %s29, 1
      // Predicated region
      $region13: #{tpu_custom_call.1} parent=11 // pred_check
        %p448 = pneg %p174
      $region14: #{tpu_custom_call.1} parent=11 // pred_check_branch
        %450 = sbr.rel (%p448) target = $region16
      $region15: #{tpu_custom_call.1} parent=11 // pred_region
        _
      $region16: #{tpu_custom_call.1} parent=11 // pred_fallthru
        _
      // Predicated region
      $region17: #{tpu_custom_call.1} parent=11 // pred_check
        %p451 = pneg %p195
      $region18: #{tpu_custom_call.1} parent=11 // pred_check_branch
        %453 = sbr.rel (%p451) target = $region20
      $region19: #{tpu_custom_call.1} parent=11 // pred_region
        _
      $region20: #{tpu_custom_call.1} parent=11 // pred_fallthru
        _
      // Predicated region
      $region21: #{tpu_custom_call.1} parent=11 // pred_check
        %p454 = pneg %p216
      $region22: #{tpu_custom_call.1} parent=11 // pred_check_branch
        %456 = sbr.rel (%p454) target = $region24
      $region23: #{tpu_custom_call.1} parent=11 // pred_region
        _
      $region24: #{tpu_custom_call.1} parent=11 // pred_fallthru
        _
      // Predicated region
      $region25: #{tpu_custom_call.1} parent=11 // pred_check
        %p457 = pneg %p237
      $region26: #{tpu_custom_call.1} parent=11 // pred_check_branch
        %459 = sbr.rel (%p457) target = $region28
      $region27: #{tpu_custom_call.1} parent=11 // pred_region
        _
      $region28: #{tpu_custom_call.1} parent=11 // pred_fallthru
        _
      // Predicated region
      $region29: #{tpu_custom_call.1} parent=11 // pred_check
        %p460 = pneg %p258
      $region30: #{tpu_custom_call.1} parent=11 // pred_check_branch
        %462 = sbr.rel (%p460) target = $region32
      $region31: #{tpu_custom_call.1} parent=11 // pred_region
        _
      $region32: #{tpu_custom_call.1} parent=11 // pred_fallthru
        _
      // Predicated region
      $region33: #{tpu_custom_call.1} parent=11 // pred_check
        %p463 = pneg %p279
      $region34: #{tpu_custom_call.1} parent=11 // pred_check_branch
        %465 = sbr.rel (%p463) target = $region36
      $region35: #{tpu_custom_call.1} parent=11 // pred_region
        _
      $region36: #{tpu_custom_call.1} parent=11 // pred_fallthru
        _
      // Predicated region
      $region37: #{tpu_custom_call.1} parent=11 // pred_check
        %p466 = pneg %p300
      $region38: #{tpu_custom_call.1} parent=11 // pred_check_branch
        %468 = sbr.rel (%p466) target = $region40
      $region39: #{tpu_custom_call.1} parent=11 // pred_region
        _
      $region40: #{tpu_custom_call.1} parent=11 // pred_fallthru
        _
      // Predicated region
      $region41: #{tpu_custom_call.1} parent=11 // pred_check
        %p469 = pneg %p321
      $region42: #{tpu_custom_call.1} parent=11 // pred_check_branch
        %471 = sbr.rel (%p469) target = $region44
      $region43: #{tpu_custom_call.1} parent=11 // pred_region
        _
      $region44: #{tpu_custom_call.1} parent=11 // pred_fallthru
        _
      // Predicated region
      $region45: #{tpu_custom_call.1} parent=11 // pred_check
        %p472 = pneg %p342
      $region46: #{tpu_custom_call.1} parent=11 // pred_check_branch
        %474 = sbr.rel (%p472) target = $region48
      $region47: #{tpu_custom_call.1} parent=11 // pred_region
        _
      $region48: #{tpu_custom_call.1} parent=11 // pred_fallthru
        _
      // Predicated region
      $region49: #{tpu_custom_call.1} parent=11 // pred_check
        %p475 = pneg %p363
      $region50: #{tpu_custom_call.1} parent=11 // pred_check_branch
        %477 = sbr.rel (%p475) target = $region52
      $region51: #{tpu_custom_call.1} parent=11 // pred_region
        _
      $region52: #{tpu_custom_call.1} parent=11 // pred_fallthru
        _
      // Predicated region
      $region53: #{tpu_custom_call.1} parent=11 // pred_check
        %p478 = pneg %p384
      $region54: #{tpu_custom_call.1} parent=11 // pred_check_branch
        %480 = sbr.rel (%p478) target = $region56
      $region55: #{tpu_custom_call.1} parent=11 // pred_region
        _
      $region56: #{tpu_custom_call.1} parent=11 // pred_fallthru
        _
      // Predicated region
      $region57: #{tpu_custom_call.1} parent=11 // pred_check
        %p481 = pneg %p405
      $region58: #{tpu_custom_call.1} parent=11 // pred_check_branch
        %483 = sbr.rel (%p481) target = $region60
      $region59: #{tpu_custom_call.1} parent=11 // pred_region
        _
      $region60: #{tpu_custom_call.1} parent=11 // pred_fallthru
        _
    $region12: #{tpu_custom_call.1} parent=5 // pred_fallthru
      _
    %p484 = scmp.lt.s32.totalorder %s29, 2
    // Predicated region
    $region61: #{tpu_custom_call.1} parent=5 // pred_check
      %p485 = pneg %p484
    $region62: #{tpu_custom_call.1} parent=5 // pred_check_branch
      %487 = sbr.rel (%p485) target = $region64
    $region63: #{tpu_custom_call.1} parent=5 // pred_region
      // Predicated region
      $region65: #{tpu_custom_call.1} parent=63 // pred_check
        %p488 = pneg %p63
      $region66: #{tpu_custom_call.1} parent=63 // pred_check_branch
        %490 = sbr.rel (%p488) target = $region68
      $region67: #{tpu_custom_call.1} parent=63 // pred_region
        %p491 = scmp.lt.s32.totalorder %s36, 1
        %s492 = scalar_select %p491, %s36, 1
        %p493 = scmp.lt.s32.totalorder %s37, 0
        %s494 = scalar_select %p493, %s37, 0
        %s495 = smul.addr %s494, 4
        %s496 = smul.addr %s492, 4
        %s497 = sadd.s32 %s495, %s496
        %s498 = smul.addr %s497, 4
        %s499 = scalar_lea.vmem %s1, %s498
      $region68: #{tpu_custom_call.1} parent=63 // pred_fallthru
        _
      // Predicated region
      $region69: #{tpu_custom_call.1} parent=63 // pred_check
        %p500 = pneg %p91
      $region70: #{tpu_custom_call.1} parent=63 // pred_check_branch
        %502 = sbr.rel (%p500) target = $region72
      $region71: #{tpu_custom_call.1} parent=63 // pred_region
        %p503 = scmp.lt.s32.totalorder %s36, 1
        %s504 = scalar_select %p503, %s36, 1
        %p505 = scmp.lt.s32.totalorder %s37, 0
        %s506 = scalar_select %p505, %s37, 0
        %s507 = smul.addr %s506, 4
        %s508 = smul.addr %s504, 4
        %s509 = sadd.s32 %s507, %s508
        %s510 = smul.addr %s509, 4
        %s511 = scalar_lea.vmem %s2, %s510
      $region72: #{tpu_custom_call.1} parent=63 // pred_fallthru
        _
      // Predicated region
      $region73: #{tpu_custom_call.1} parent=63 // pred_check
        %p512 = pneg %p119
      $region74: #{tpu_custom_call.1} parent=63 // pred_check_branch
        %514 = sbr.rel (%p512) target = $region76
      $region75: #{tpu_custom_call.1} parent=63 // pred_region
        %p515 = scmp.lt.s32.totalorder %s36, 1
        %s516 = scalar_select %p515, %s36, 1
        %p517 = scmp.lt.s32.totalorder %s37, 0
        %s518 = scalar_select %p517, %s37, 0
        %s519 = smul.addr %s518, 3
        %s520 = smul.addr %s516, 3
        %s521 = sadd.s32 %s519, %s520
        %s522 = scalar_lea.vmem %s3, %s521
      $region76: #{tpu_custom_call.1} parent=63 // pred_fallthru
        _
      // Predicated region
      $region77: #{tpu_custom_call.1} parent=63 // pred_check
        %p523 = pneg %p147
      $region78: #{tpu_custom_call.1} parent=63 // pred_check_branch
        %525 = sbr.rel (%p523) target = $region80
      $region79: #{tpu_custom_call.1} parent=63 // pred_region
        %p526 = scmp.lt.s32.totalorder %s36, 1
        %s527 = scalar_select %p526, %s36, 1
        %p528 = scmp.lt.s32.totalorder %s37, 0
        %s529 = scalar_select %p528, %s37, 0
        %s530 = smul.addr %s529, 3
        %s531 = smul.addr %s527, 3
        %s532 = sadd.s32 %s530, %s531
        %s533 = scalar_lea.vmem %s4, %s532
      $region80: #{tpu_custom_call.1} parent=63 // pred_fallthru
        _
    $region64: #{tpu_custom_call.1} parent=5 // pred_fallthru
      _
    %p534 = scmp.le.s32.totalorder 1, %s29
    %p535 = scmp.lt.s32.totalorder %s29, 3
    %p536 = pnand %p534, %p535
    %p537 = pneg %p536
    // Predicated region
    $region81: #{tpu_custom_call.1} parent=5 // pred_check
      _
    $region82: #{tpu_custom_call.1} parent=5 // pred_check_branch
      %539 = sbr.rel (%p536) target = $region84
    $region83: #{tpu_custom_call.1} parent=5 // pred_region
      %s540 = ssub.s32 %s29, 1
      %p541 = scmp.lt.s32.totalorder %s38, 1
      %s542 = scalar_select %p541, %s38, 1
      %p543 = scmp.lt.s32.totalorder %s39, 0
      %s544 = scalar_select %p543, %s39, 0
      %s545 = smul.addr %s544, 4
      %s546 = smul.addr %s542, 4
      %s547 = sadd.s32 %s545, %s546
      %s548 = smul.addr %s547, 4
      %s549 = scalar_lea.vmem %s1, %s548
      %p550 = pneg %p69
      %p551 = pneg %p66
      %p552 = scmp.lt.s32.totalorder %s38, 1
      %s553 = scalar_select %p552, %s38, 1
      %p554 = scmp.lt.s32.totalorder %s39, 0
      %s555 = scalar_select %p554, %s39, 0
      %s556 = smul.addr %s555, 4
      %s557 = smul.addr %s553, 4
      %s558 = sadd.s32 %s556, %s557
      %s559 = smul.addr %s558, 4
      %s560 = scalar_lea.vmem %s2, %s559
      %p561 = pneg %p97
      %p562 = pneg %p94
      %p563 = scmp.lt.s32.totalorder %s38, 1
      %s564 = scalar_select %p563, %s38, 1
      %p565 = scmp.lt.s32.totalorder %s39, 0
      %s566 = scalar_select %p565, %s39, 0
      %s567 = smul.addr %s566, 3
      %s568 = smul.addr %s564, 3
      %s569 = sadd.s32 %s567, %s568
      %s570 = scalar_lea.vmem %s3, %s569
      %p571 = pneg %p125
      %p572 = pneg %p122
      %p573 = scmp.lt.s32.totalorder %s38, 1
      %s574 = scalar_select %p573, %s38, 1
      %p575 = scmp.lt.s32.totalorder %s39, 0
      %s576 = scalar_select %p575, %s39, 0
      %s577 = smul.addr %s576, 3
      %s578 = smul.addr %s574, 3
      %s579 = sadd.s32 %s577, %s578
      %s580 = scalar_lea.vmem %s4, %s579
      %p581 = pneg %p153
      %p582 = pneg %p150
      %p583 = pneg %p174
      %p584 = pneg %p171
      %p585 = pneg %p195
      %p586 = pneg %p192
      %p587 = pneg %p216
      %p588 = pneg %p213
      %p589 = pneg %p237
      %p590 = pneg %p234
      %p591 = pneg %p258
      %p592 = pneg %p255
      %p593 = pneg %p279
      %p594 = pneg %p276
      %p595 = pneg %p300
      %p596 = pneg %p297
      %p597 = pneg %p321
      %p598 = pneg %p318
      %p599 = pneg %p342
      %p600 = pneg %p339
      %p601 = pneg %p363
      %p602 = pneg %p360
      %p603 = pneg %p384
      %p604 = pneg %p381
      %p605 = pneg %p405
      %p606 = pneg %p402
      %p607 = pneg %p433
      %p608 = pneg %p430
      %p609 = scmp.lt.s32.totalorder %s38, 1
      %s610 = scalar_select %p609, %s38, 1
      %p611 = scmp.lt.s32.totalorder %s39, 0
      %s612 = scalar_select %p611, %s39, 0
      %s613 = sadd.s32 %s612, %s610
      %s614 = smul.addr %s613, 4
      %s615 = scalar_lea.vmem %s17, %s614
      %p616 = scmp.lt.s32.totalorder %s38, 1
      %s617 = scalar_select %p616, %s38, 1
      %p618 = scmp.lt.s32.totalorder %s39, 0
      %s619 = scalar_select %p618, %s39, 0
      %s620 = smul.addr %s619, 4
      %s621 = smul.addr %s617, 4
      %s622 = sadd.s32 %s620, %s621
      %s623 = smul.addr %s622, 4
      %s624 = scalar_lea.vmem %s1, %s623
      %p625 = scmp.lt.s32.totalorder %s38, 1
      %s626 = scalar_select %p625, %s38, 1
      %p627 = scmp.lt.s32.totalorder %s39, 0
      %s628 = scalar_select %p627, %s39, 0
      %s629 = smul.addr %s628, 4
      %s630 = smul.addr %s626, 4
      %s631 = sadd.s32 %s629, %s630
      %s632 = smul.addr %s631, 4
      %s633 = scalar_lea.vmem %s2, %s632
      %p634 = scmp.lt.s32.totalorder %s38, 1
      %s635 = scalar_select %p634, %s38, 1
      %p636 = scmp.lt.s32.totalorder %s39, 0
      %s637 = scalar_select %p636, %s39, 0
      %s638 = smul.addr %s637, 3
      %s639 = smul.addr %s635, 3
      %s640 = sadd.s32 %s638, %s639
      %s641 = scalar_lea.vmem %s3, %s640
      %p642 = scmp.lt.s32.totalorder %s38, 1
      %s643 = scalar_select %p642, %s38, 1
      %p644 = scmp.lt.s32.totalorder %s39, 0
      %s645 = scalar_select %p644, %s39, 0
      %s646 = smul.addr %s645, 3
      %s647 = smul.addr %s643, 3
      %s648 = sadd.s32 %s646, %s647
      %s649 = scalar_lea.vmem %s4, %s648
      %p650 = scmp.lt.s32.totalorder %s38, 1
      %s651 = scalar_select %p650, %s38, 1
      %p652 = scmp.lt.s32.totalorder %s39, 0
      %s653 = scalar_select %p652, %s39, 0
      %s654 = sadd.s32 %s653, %s651
      %s655 = smul.addr %s654, 4
      %s656 = scalar_lea.vmem %s17, %s655
      %s658 = sld [smem:[#allocation3 + %s38]]
      %v659 = vld [vmem:[%s624] sm:$0xf]
      %v660 = vld [vmem:[%s624 + $0x4] sm:$0xf]
      %v661 = vld [vmem:[%s624 + $0x8] sm:$0xf]
      %v662 = vld [vmem:[%s624 + $0xc] sm:$0xf]
      %v663 = vld [vmem:[%s5] sm:$0xf]
      %v664 = vld [vmem:[%s5 + $0x4] sm:$0xf]
      %v665 = vld [vmem:[%s5 + $0x8] sm:$0xf]
      %v666 = vld [vmem:[%s5 + $0xc] sm:$0xf]
      %v667 = vld [vmem:[%s6] sm:$0xff]
      %v668 = vld [vmem:[%s6 + $0x8] sm:$0xff]
      %v669 = vld [vmem:[%s6 + $0x10] sm:$0xff]
      %v670 = vld [vmem:[%s6 + $0x18] sm:$0xff]
      %v671 = vld [vmem:[%s7] sm:$0xf]
      %v672 = vld [vmem:[%s7 + $0x4] sm:$0xf]
      %v673 = vld [vmem:[%s7 + $0x8] sm:$0xf]
      %v674 = vld [vmem:[%s7 + $0xc] sm:$0xf]
      %v675 = vld [vmem:[%s8] sm:$0xff]
      %v676 = vld [vmem:[%s8 + $0x8] sm:$0xff]
      %v677 = vld [vmem:[%s8 + $0x10] sm:$0xff]
      %v678 = vld [vmem:[%s8 + $0x18] sm:$0xff]
      %v679 = vld [vmem:[%s9] sm:$0x1]
      %v680 = vld [vmem:[%s10] sm:$0x3]
      %682 = vset.pattern.permute.xlu0 0
      %683 = vperm.xlu0 %682, %v667
      %v684 = vpop.permute.xlu0 %683
      %687 = vset.pattern.permute.xlu0 0
      %688 = vperm.xlu0 %687, %v668
      %v689 = vpop.permute.xlu0 %688
      %692 = vset.pattern.permute.xlu0 0
      %693 = vperm.xlu0 %692, %v669
      %v694 = vpop.permute.xlu0 %693
      %697 = vset.pattern.permute.xlu0 0
      %698 = vperm.xlu0 %697, %v670
      %v699 = vpop.permute.xlu0 %698
      %v705 = vunpack.c.l.b16 %v663
      %v706 = vunpack.c.l.b16 %v664
      %v707 = vunpack.c.l.b16 %v665
      %v708 = vunpack.c.l.b16 %v666
      %v709 = vpack.c.b16 %v706, %v705
      %v710 = vpack.c.b16 %v708, %v707
      %v715 = vunpack.c.l.b16 %v659
      %v716 = vunpack.c.l.b16 %v660
      %v717 = vunpack.c.l.b16 %v661
      %v718 = vunpack.c.l.b16 %v662
      %v719 = vpack.c.b16 %v716, %v715
      %v720 = vpack.c.b16 %v718, %v717
      %vm723 = vcmask 261120
      %v725 = vsel %vm723, %v709, 0
      %v728 = vsel %vm723, %v710, 0
      %730 = vmatprep.subr.bf16.mxu0 0
      %731 = vmatpush1.bf16.msra.mxu0 %v719
      %732 = vmatprep.subr.bf16.mxu0 0
      %733 = vmatpush1.bf16.msra.mxu0 %v720
      %734 = vmatprep.subr.bf16.mxu0 0
      %735 = vmatpush1.bf16.msra.mxu0 0
      %736 = vmatprep.subr.bf16.mxu0 0
      %737 = vmatpush1.bf16.msra.mxu0 0
      %738 = vmatprep.subr.bf16.mxu0 0
      %739 = vmatpush1.bf16.msra.mxu0 0
      %740 = vmatprep.subr.bf16.mxu0 0
      %741 = vmatpush1.bf16.msra.mxu0 0
      %742 = vmatprep.subr.bf16.mxu0 0
      %743 = vmatpush1.bf16.msra.mxu0 0
      %744 = vmatprep.subr.bf16.mxu0 0
      %745 = vmatpush1.bf16.msra.mxu0 0
      %746 = vmatprep.subr.bf16.mxu0 0
      %747 = vmatpush1.bf16.msra.mxu0 0
      %748 = vmatprep.subr.bf16.mxu0 0
      %749 = vmatpush1.bf16.msra.mxu0 0
      %750 = vmatprep.subr.bf16.mxu0 0
      %751 = vmatpush1.bf16.msra.mxu0 0
      %752 = vmatprep.subr.bf16.mxu0 0
      %753 = vmatpush1.bf16.msra.mxu0 0
      %754 = vmatprep.subr.bf16.mxu0 0
      %755 = vmatpush1.bf16.msra.mxu0 0
      %756 = vmatprep.subr.bf16.mxu0 0
      %757 = vmatpush1.bf16.msra.mxu0 0
      %758 = vmatprep.subr.bf16.mxu0 0
      %759 = vmatpush1.bf16.msra.mxu0 0
      %760 = vmatprep.subr.bf16.mxu0 0
      %761 = vmatpush1.bf16.msra.mxu0 0
      %762 = vmatprep.mubr.bf16.mxu0 0
      %763 = vmatmul.mubr.bf16.gmra.mrb[0].mxu0 %v725
      %v764 = vpop.f32.mrb[0].mxu0
      %v765 = vadd.f32 %v684, %v764
      %v766 = vpop.f32.mrb[0].mxu0
      %v767 = vpop.f32.mrb[0].mxu0
      %v768 = vadd.f32 %v689, %v767
      %v769 = vpop.f32.mrb[0].mxu0
      %770 = vmatprep.mubr.bf16.mxu0 0
      %771 = vmatmul.mubr.bf16.gmra.mrb[0].mxu0 %v728
      %v772 = vpop.f32.mrb[0].mxu0
      %v773 = vadd.f32 %v694, %v772
      %v774 = vpop.f32.mrb[0].mxu0
      %v775 = vpop.f32.mrb[0].mxu0
      %v776 = vadd.f32 %v699, %v775
      %v777 = vpop.f32.mrb[0].mxu0
      %778 = vdwg.mxu0
      %v779 = vmax.f32 %v765, 0.0
      %v780 = vmax.f32 %v768, 0.0
      %v781 = vmax.f32 %v773, 0.0
      %v782 = vmax.f32 %v776, 0.0
      %v783 = vpack.c.bf16 %v780, %v779
      %v784 = vpack.c.bf16 %v782, %v781
      %786 = vset.pattern.permute.xlu0 0
      %787 = vperm.xlu0 %786, %v675
      %v788 = vpop.permute.xlu0 %787
      %791 = vset.pattern.permute.xlu0 0
      %792 = vperm.xlu0 %791, %v676
      %v793 = vpop.permute.xlu0 %792
      %796 = vset.pattern.permute.xlu0 0
      %797 = vperm.xlu0 %796, %v677
      %v798 = vpop.permute.xlu0 %797
      %801 = vset.pattern.permute.xlu0 0
      %802 = vperm.xlu0 %801, %v678
      %v803 = vpop.permute.xlu0 %802
      %v809 = vunpack.c.l.b16 %v671
      %v810 = vunpack.c.l.b16 %v672
      %v811 = vunpack.c.l.b16 %v673
      %v812 = vunpack.c.l.b16 %v674
      %v813 = vpack.c.b16 %v810, %v809
      %v814 = vpack.c.b16 %v812, %v811
      %v816 = vsel %vm723, %v813, 0
      %v819 = vsel %vm723, %v814, 0
      %821 = vmatprep.subr.bf16.mxu0 0
      %822 = vmatpush1.bf16.msra.mxu0 %v783
      %823 = vmatprep.subr.bf16.mxu0 0
      %824 = vmatpush1.bf16.msra.mxu0 %v784
      %825 = vmatprep.subr.bf16.mxu0 0
      %826 = vmatpush1.bf16.msra.mxu0 0
      %827 = vmatprep.subr.bf16.mxu0 0
      %828 = vmatpush1.bf16.msra.mxu0 0
      %829 = vmatprep.subr.bf16.mxu0 0
      %830 = vmatpush1.bf16.msra.mxu0 0
      %831 = vmatprep.subr.bf16.mxu0 0
      %832 = vmatpush1.bf16.msra.mxu0 0
      %833 = vmatprep.subr.bf16.mxu0 0
      %834 = vmatpush1.bf16.msra.mxu0 0
      %835 = vmatprep.subr.bf16.mxu0 0
      %836 = vmatpush1.bf16.msra.mxu0 0
      %837 = vmatprep.subr.bf16.mxu0 0
      %838 = vmatpush1.bf16.msra.mxu0 0
      %839 = vmatprep.subr.bf16.mxu0 0
      %840 = vmatpush1.bf16.msra.mxu0 0
      %841 = vmatprep.subr.bf16.mxu0 0
      %842 = vmatpush1.bf16.msra.mxu0 0
      %843 = vmatprep.subr.bf16.mxu0 0
      %844 = vmatpush1.bf16.msra.mxu0 0
      %845 = vmatprep.subr.bf16.mxu0 0
      %846 = vmatpush1.bf16.msra.mxu0 0
      %847 = vmatprep.subr.bf16.mxu0 0
      %848 = vmatpush1.bf16.msra.mxu0 0
      %849 = vmatprep.subr.bf16.mxu0 0
      %850 = vmatpush1.bf16.msra.mxu0 0
      %851 = vmatprep.subr.bf16.mxu0 0
      %852 = vmatpush1.bf16.msra.mxu0 0
      %853 = vmatprep.mubr.bf16.mxu0 0
      %854 = vmatmul.mubr.bf16.gmra.mrb[0].mxu0 %v816
      %v855 = vpop.f32.mrb[0].mxu0
      %v856 = vadd.f32 %v788, %v855
      %v857 = vpop.f32.mrb[0].mxu0
      %v858 = vpop.f32.mrb[0].mxu0
      %v859 = vadd.f32 %v793, %v858
      %v860 = vpop.f32.mrb[0].mxu0
      %861 = vmatprep.mubr.bf16.mxu0 0
      %862 = vmatmul.mubr.bf16.gmra.mrb[0].mxu0 %v819
      %v863 = vpop.f32.mrb[0].mxu0
      %v864 = vadd.f32 %v798, %v863
      %v865 = vpop.f32.mrb[0].mxu0
      %v866 = vpop.f32.mrb[0].mxu0
      %v867 = vadd.f32 %v803, %v866
      %v868 = vpop.f32.mrb[0].mxu0
      %869 = vdwg.mxu0
      %v870 = vmax.f32 %v856, 0.0
      %v871 = vmax.f32 %v859, 0.0
      %v872 = vmax.f32 %v864, 0.0
      %v873 = vmax.f32 %v867, 0.0
      %v874 = vpack.c.bf16 %v871, %v870
      %v875 = vpack.c.bf16 %v873, %v872
      %877 = vset.pattern.permute.xlu0 0
      %878 = vperm.xlu0 %877, %v680
      %v879 = vpop.permute.xlu0 %878
      %v882 = vsel %vm723, %v679, 0
      %884 = vmatprep.subr.bf16.mxu0 0
      %885 = vmatpush1.bf16.msra.mxu0 %v874
      %886 = vmatprep.subr.bf16.mxu0 0
      %887 = vmatpush1.bf16.msra.mxu0 %v875
      %888 = vmatprep.subr.bf16.mxu0 0
      %889 = vmatpush1.bf16.msra.mxu0 0
      %890 = vmatprep.subr.bf16.mxu0 0
      %891 = vmatpush1.bf16.msra.mxu0 0
      %892 = vmatprep.subr.bf16.mxu0 0
      %893 = vmatpush1.bf16.msra.mxu0 0
      %894 = vmatprep.subr.bf16.mxu0 0
      %895 = vmatpush1.bf16.msra.mxu0 0
      %896 = vmatprep.subr.bf16.mxu0 0
      %897 = vmatpush1.bf16.msra.mxu0 0
      %898 = vmatprep.subr.bf16.mxu0 0
      %899 = vmatpush1.bf16.msra.mxu0 0
      %900 = vmatprep.subr.bf16.mxu0 0
      %901 = vmatpush1.bf16.msra.mxu0 0
      %902 = vmatprep.subr.bf16.mxu0 0
      %903 = vmatpush1.bf16.msra.mxu0 0
      %904 = vmatprep.subr.bf16.mxu0 0
      %905 = vmatpush1.bf16.msra.mxu0 0
      %906 = vmatprep.subr.bf16.mxu0 0
      %907 = vmatpush1.bf16.msra.mxu0 0
      %908 = vmatprep.subr.bf16.mxu0 0
      %909 = vmatpush1.bf16.msra.mxu0 0
      %910 = vmatprep.subr.bf16.mxu0 0
      %911 = vmatpush1.bf16.msra.mxu0 0
      %912 = vmatprep.subr.bf16.mxu0 0
      %913 = vmatpush1.bf16.msra.mxu0 0
      %914 = vmatprep.subr.bf16.mxu0 0
      %915 = vmatpush1.bf16.msra.mxu0 0
      %916 = vmatprep.mubr.bf16.mxu0 0
      %917 = vmatmul.mubr.bf16.gmra.mrb[0].mxu0 %v882
      %v918 = vpop.f32.mrb[0].mxu0
      %v919 = vadd.f32 %v879, %v918
      %v920 = vpop.f32.mrb[0].mxu0
      %v921 = vpop.f32.mrb[0].mxu0
      %v922 = vpop.f32.mrb[0].mxu0
      %923 = vdwg.mxu0
      %v924 = vld [vmem:[%s633] sm:$0xf]
      %v925 = vld [vmem:[%s633 + $0x4] sm:$0xf]
      %v926 = vld [vmem:[%s633 + $0x8] sm:$0xf]
      %v927 = vld [vmem:[%s633 + $0xc] sm:$0xf]
      %v928 = vld [vmem:[%s11] sm:$0xf]
      %v929 = vld [vmem:[%s11 + $0x4] sm:$0xf]
      %v930 = vld [vmem:[%s11 + $0x8] sm:$0xf]
      %v931 = vld [vmem:[%s11 + $0xc] sm:$0xf]
      %v932 = vld [vmem:[%s12] sm:$0xff]
      %v933 = vld [vmem:[%s12 + $0x8] sm:$0xff]
      %v934 = vld [vmem:[%s12 + $0x10] sm:$0xff]
      %v935 = vld [vmem:[%s12 + $0x18] sm:$0xff]
      %v936 = vld [vmem:[%s13] sm:$0xf]
      %v937 = vld [vmem:[%s13 + $0x4] sm:$0xf]
      %v938 = vld [vmem:[%s13 + $0x8] sm:$0xf]
      %v939 = vld [vmem:[%s13 + $0xc] sm:$0xf]
      %v940 = vld [vmem:[%s14] sm:$0xff]
      %v941 = vld [vmem:[%s14 + $0x8] sm:$0xff]
      %v942 = vld [vmem:[%s14 + $0x10] sm:$0xff]
      %v943 = vld [vmem:[%s14 + $0x18] sm:$0xff]
      %v944 = vld [vmem:[%s15] sm:$0x1]
      %v945 = vld [vmem:[%s16] sm:$0x3]
      %947 = vset.pattern.permute.xlu0 0
      %948 = vperm.xlu0 %947, %v932
      %v949 = vpop.permute.xlu0 %948
      %952 = vset.pattern.permute.xlu0 0
      %953 = vperm.xlu0 %952, %v933
      %v954 = vpop.permute.xlu0 %953
      %957 = vset.pattern.permute.xlu0 0
      %958 = vperm.xlu0 %957, %v934
      %v959 = vpop.permute.xlu0 %958
      %962 = vset.pattern.permute.xlu0 0
      %963 = vperm.xlu0 %962, %v935
      %v964 = vpop.permute.xlu0 %963
      %v970 = vunpack.c.l.b16 %v928
      %v971 = vunpack.c.l.b16 %v929
      %v972 = vunpack.c.l.b16 %v930
      %v973 = vunpack.c.l.b16 %v931
      %v974 = vpack.c.b16 %v971, %v970
      %v975 = vpack.c.b16 %v973, %v972
      %v980 = vunpack.c.l.b16 %v924
      %v981 = vunpack.c.l.b16 %v925
      %v982 = vunpack.c.l.b16 %v926
      %v983 = vunpack.c.l.b16 %v927
      %v984 = vpack.c.b16 %v981, %v980
      %v985 = vpack.c.b16 %v983, %v982
      %v989 = vsel %vm723, %v974, 0
      %v992 = vsel %vm723, %v975, 0
      %994 = vmatprep.subr.bf16.mxu0 0
      %995 = vmatpush1.bf16.msra.mxu0 %v984
      %996 = vmatprep.subr.bf16.mxu0 0
      %997 = vmatpush1.bf16.msra.mxu0 %v985
      %998 = vmatprep.subr.bf16.mxu0 0
      %999 = vmatpush1.bf16.msra.mxu0 0
      %1000 = vmatprep.subr.bf16.mxu0 0
      %1001 = vmatpush1.bf16.msra.mxu0 0
      %1002 = vmatprep.subr.bf16.mxu0 0
      %1003 = vmatpush1.bf16.msra.mxu0 0
      %1004 = vmatprep.subr.bf16.mxu0 0
      %1005 = vmatpush1.bf16.msra.mxu0 0
      %1006 = vmatprep.subr.bf16.mxu0 0
      %1007 = vmatpush1.bf16.msra.mxu0 0
      %1008 = vmatprep.subr.bf16.mxu0 0
      %1009 = vmatpush1.bf16.msra.mxu0 0
      %1010 = vmatprep.subr.bf16.mxu0 0
      %1011 = vmatpush1.bf16.msra.mxu0 0
      %1012 = vmatprep.subr.bf16.mxu0 0
      %1013 = vmatpush1.bf16.msra.mxu0 0
      %1014 = vmatprep.subr.bf16.mxu0 0
      %1015 = vmatpush1.bf16.msra.mxu0 0
      %1016 = vmatprep.subr.bf16.mxu0 0
      %1017 = vmatpush1.bf16.msra.mxu0 0
      %1018 = vmatprep.subr.bf16.mxu0 0
      %1019 = vmatpush1.bf16.msra.mxu0 0
      %1020 = vmatprep.subr.bf16.mxu0 0
      %1021 = vmatpush1.bf16.msra.mxu0 0
      %1022 = vmatprep.subr.bf16.mxu0 0
      %1023 = vmatpush1.bf16.msra.mxu0 0
      %1024 = vmatprep.subr.bf16.mxu0 0
      %1025 = vmatpush1.bf16.msra.mxu0 0
      %1026 = vmatprep.mubr.bf16.mxu0 0
      %1027 = vmatmul.mubr.bf16.gmra.mrb[0].mxu0 %v989
      %v1028 = vpop.f32.mrb[0].mxu0
      %v1029 = vadd.f32 %v949, %v1028
      %v1030 = vpop.f32.mrb[0].mxu0
      %v1031 = vpop.f32.mrb[0].mxu0
      %v1032 = vadd.f32 %v954, %v1031
      %v1033 = vpop.f32.mrb[0].mxu0
      %1034 = vmatprep.mubr.bf16.mxu0 0
      %1035 = vmatmul.mubr.bf16.gmra.mrb[0].mxu0 %v992
      %v1036 = vpop.f32.mrb[0].mxu0
      %v1037 = vadd.f32 %v959, %v1036
      %v1038 = vpop.f32.mrb[0].mxu0
      %v1039 = vpop.f32.mrb[0].mxu0
      %v1040 = vadd.f32 %v964, %v1039
      %v1041 = vpop.f32.mrb[0].mxu0
      %1042 = vdwg.mxu0
      %v1043 = vmax.f32 %v1029, 0.0
      %v1044 = vmax.f32 %v1032, 0.0
      %v1045 = vmax.f32 %v1037, 0.0
      %v1046 = vmax.f32 %v1040, 0.0
      %v1047 = vpack.c.bf16 %v1044, %v1043
      %v1048 = vpack.c.bf16 %v1046, %v1045
      %1050 = vset.pattern.permute.xlu0 0
      %1051 = vperm.xlu0 %1050, %v940
      %v1052 = vpop.permute.xlu0 %1051
      %1055 = vset.pattern.permute.xlu0 0
      %1056 = vperm.xlu0 %1055, %v941
      %v1057 = vpop.permute.xlu0 %1056
      %1060 = vset.pattern.permute.xlu0 0
      %1061 = vperm.xlu0 %1060, %v942
      %v1062 = vpop.permute.xlu0 %1061
      %1065 = vset.pattern.permute.xlu0 0
      %1066 = vperm.xlu0 %1065, %v943
      %v1067 = vpop.permute.xlu0 %1066
      %v1073 = vunpack.c.l.b16 %v936
      %v1074 = vunpack.c.l.b16 %v937
      %v1075 = vunpack.c.l.b16 %v938
      %v1076 = vunpack.c.l.b16 %v939
      %v1077 = vpack.c.b16 %v1074, %v1073
      %v1078 = vpack.c.b16 %v1076, %v1075
      %v1080 = vsel %vm723, %v1077, 0
      %v1083 = vsel %vm723, %v1078, 0
      %1085 = vmatprep.subr.bf16.mxu0 0
      %1086 = vmatpush1.bf16.msra.mxu0 %v1047
      %1087 = vmatprep.subr.bf16.mxu0 0
      %1088 = vmatpush1.bf16.msra.mxu0 %v1048
      %1089 = vmatprep.subr.bf16.mxu0 0
      %1090 = vmatpush1.bf16.msra.mxu0 0
      %1091 = vmatprep.subr.bf16.mxu0 0
      %1092 = vmatpush1.bf16.msra.mxu0 0
      %1093 = vmatprep.subr.bf16.mxu0 0
      %1094 = vmatpush1.bf16.msra.mxu0 0
      %1095 = vmatprep.subr.bf16.mxu0 0
      %1096 = vmatpush1.bf16.msra.mxu0 0
      %1097 = vmatprep.subr.bf16.mxu0 0
      %1098 = vmatpush1.bf16.msra.mxu0 0
      %1099 = vmatprep.subr.bf16.mxu0 0
      %1100 = vmatpush1.bf16.msra.mxu0 0
      %1101 = vmatprep.subr.bf16.mxu0 0
      %1102 = vmatpush1.bf16.msra.mxu0 0
      %1103 = vmatprep.subr.bf16.mxu0 0
      %1104 = vmatpush1.bf16.msra.mxu0 0
      %1105 = vmatprep.subr.bf16.mxu0 0
      %1106 = vmatpush1.bf16.msra.mxu0 0
      %1107 = vmatprep.subr.bf16.mxu0 0
      %1108 = vmatpush1.bf16.msra.mxu0 0
      %1109 = vmatprep.subr.bf16.mxu0 0
      %1110 = vmatpush1.bf16.msra.mxu0 0
      %1111 = vmatprep.subr.bf16.mxu0 0
      %1112 = vmatpush1.bf16.msra.mxu0 0
      %1113 = vmatprep.subr.bf16.mxu0 0
      %1114 = vmatpush1.bf16.msra.mxu0 0
      %1115 = vmatprep.subr.bf16.mxu0 0
      %1116 = vmatpush1.bf16.msra.mxu0 0
      %1117 = vmatprep.mubr.bf16.mxu0 0
      %1118 = vmatmul.mubr.bf16.gmra.mrb[0].mxu0 %v1080
      %v1119 = vpop.f32.mrb[0].mxu0
      %v1120 = vadd.f32 %v1052, %v1119
      %v1121 = vpop.f32.mrb[0].mxu0
      %v1122 = vpop.f32.mrb[0].mxu0
      %v1123 = vadd.f32 %v1057, %v1122
      %v1124 = vpop.f32.mrb[0].mxu0
      %1125 = vmatprep.mubr.bf16.mxu0 0
      %1126 = vmatmul.mubr.bf16.gmra.mrb[0].mxu0 %v1083
      %v1127 = vpop.f32.mrb[0].mxu0
      %v1128 = vadd.f32 %v1062, %v1127
      %v1129 = vpop.f32.mrb[0].mxu0
      %v1130 = vpop.f32.mrb[0].mxu0
      %v1131 = vadd.f32 %v1067, %v1130
      %v1132 = vpop.f32.mrb[0].mxu0
      %1133 = vdwg.mxu0
      %v1134 = vmax.f32 %v1120, 0.0
      %v1135 = vmax.f32 %v1123, 0.0
      %v1136 = vmax.f32 %v1128, 0.0
      %v1137 = vmax.f32 %v1131, 0.0
      %v1138 = vpack.c.bf16 %v1135, %v1134
      %v1139 = vpack.c.bf16 %v1137, %v1136
      %1141 = vset.pattern.permute.xlu0 0
      %1142 = vperm.xlu0 %1141, %v945
      %v1143 = vpop.permute.xlu0 %1142
      %v1146 = vsel %vm723, %v944, 0
      %1148 = vmatprep.subr.bf16.mxu0 0
      %1149 = vmatpush1.bf16.msra.mxu0 %v1138
      %1150 = vmatprep.subr.bf16.mxu0 0
      %1151 = vmatpush1.bf16.msra.mxu0 %v1139
      %1152 = vmatprep.subr.bf16.mxu0 0
      %1153 = vmatpush1.bf16.msra.mxu0 0
      %1154 = vmatprep.subr.bf16.mxu0 0
      %1155 = vmatpush1.bf16.msra.mxu0 0
      %1156 = vmatprep.subr.bf16.mxu0 0
      %1157 = vmatpush1.bf16.msra.mxu0 0
      %1158 = vmatprep.subr.bf16.mxu0 0
      %1159 = vmatpush1.bf16.msra.mxu0 0
      %1160 = vmatprep.subr.bf16.mxu0 0
      %1161 = vmatpush1.bf16.msra.mxu0 0
      %1162 = vmatprep.subr.bf16.mxu0 0
      %1163 = vmatpush1.bf16.msra.mxu0 0
      %1164 = vmatprep.subr.bf16.mxu0 0
      %1165 = vmatpush1.bf16.msra.mxu0 0
      %1166 = vmatprep.subr.bf16.mxu0 0
      %1167 = vmatpush1.bf16.msra.mxu0 0
      %1168 = vmatprep.subr.bf16.mxu0 0
      %1169 = vmatpush1.bf16.msra.mxu0 0
      %1170 = vmatprep.subr.bf16.mxu0 0
      %1171 = vmatpush1.bf16.msra.mxu0 0
      %1172 = vmatprep.subr.bf16.mxu0 0
      %1173 = vmatpush1.bf16.msra.mxu0 0
      %1174 = vmatprep.subr.bf16.mxu0 0
      %1175 = vmatpush1.bf16.msra.mxu0 0
      %1176 = vmatprep.subr.bf16.mxu0 0
      %1177 = vmatpush1.bf16.msra.mxu0 0
      %1178 = vmatprep.subr.bf16.mxu0 0
      %1179 = vmatpush1.bf16.msra.mxu0 0
      %1180 = vmatprep.mubr.bf16.mxu0 0
      %1181 = vmatmul.mubr.bf16.gmra.mrb[0].mxu0 %v1146
      %v1182 = vpop.f32.mrb[0].mxu0
      %v1183 = vadd.f32 %v1143, %v1182
      %v1184 = vpop.f32.mrb[0].mxu0
      %v1185 = vpop.f32.mrb[0].mxu0
      %v1186 = vpop.f32.mrb[0].mxu0
      %1187 = vdwg.mxu0
      %v1188 = vld [vmem:[%s641] sm:$0x1]
      %v1189 = vunpack.c.l.bf16 %v1188
      %v1190 = vld [vmem:[%s649] sm:$0x1]
      %v1191 = vunpack.c.l.bf16 %v1190
      %v1192 = vmul.f32 %v919, %v1189
      %vm1193 = vcmask 58368
      %v1194 = vsel %vm1193, %v1192, 0.0
      %v1195 = vrot.slane %v1194, 4
      %v1196 = vadd.f32 %v1194, %v1195
      %v1197 = vrot.slane %v1196, 2
      %v1198 = vadd.f32 %v1196, %v1197
      %v1199 = vrot.slane %v1198, 1
      %v1200 = vadd.f32 %v1198, %v1199
      %v1201 = vmul.f32 %v1183, %v1191
      %vm1202 = vcmask 517120
      %v1203 = vsel %vm1202, %v1201, 0.0
      %v1204 = vrot.slane %v1203, 4
      %v1205 = vadd.f32 %v1203, %v1204
      %v1206 = vrot.slane %v1205, 2
      %v1207 = vadd.f32 %v1205, %v1206
      %v1208 = vrot.slane %v1207, 1
      %v1209 = vadd.f32 %v1207, %v1208
      %1211 = vrot.lane.b32.xlu0 %v1209, 120
      %v1212 = vpop.permute.xlu0 %1211
      %v1214 = vadd.f32 %v1209, %v1212
      %1216 = vrot.lane.b32.xlu0 %v1214, 112
      %v1217 = vpop.permute.xlu0 %1216
      %v1219 = vadd.f32 %v1214, %v1217
      %1221 = vrot.lane.b32.xlu0 %v1219, 96
      %v1222 = vpop.permute.xlu0 %1221
      %v1224 = vadd.f32 %v1219, %v1222
      %v1225 = vstv %s658
      %v1226 = vmul.f32 %v1224, %v1225
      %v1227 = vadd.f32 %v1200, %v1226
      %v1228 = vmul.f32 %v1227, %v1225
      %vm1229 = vcmask 57344
      %1230 = vst.msk [vmem:[%s656] sm:$0x1] %vm1229, %v1228
      %s1231 = scalar_lea.vmem %s641, 1
      %v1232 = vld [vmem:[%s1231] sm:$0x1]
      %v1233 = vunpack.c.l.bf16 %v1232
      %s1234 = scalar_lea.vmem %s649, 1
      %v1235 = vld [vmem:[%s1234] sm:$0x1]
      %v1236 = vunpack.c.l.bf16 %v1235
      %v1237 = vmul.f32 %v919, %v1233
      %v1238 = vsel %vm1193, %v1237, 0.0
      %v1239 = vrot.slane %v1238, 4
      %v1240 = vadd.f32 %v1238, %v1239
      %v1241 = vrot.slane %v1240, 2
      %v1242 = vadd.f32 %v1240, %v1241
      %v1243 = vrot.slane %v1242, 1
      %v1244 = vadd.f32 %v1242, %v1243
      %v1245 = vmul.f32 %v1183, %v1236
      %v1246 = vsel %vm1202, %v1245, 0.0
      %v1247 = vrot.slane %v1246, 4
      %v1248 = vadd.f32 %v1246, %v1247
      %v1249 = vrot.slane %v1248, 2
      %v1250 = vadd.f32 %v1248, %v1249
      %v1251 = vrot.slane %v1250, 1
      %v1252 = vadd.f32 %v1250, %v1251
      %1254 = vrot.lane.b32.xlu0 %v1252, 120
      %v1255 = vpop.permute.xlu0 %1254
      %v1257 = vadd.f32 %v1252, %v1255
      %1259 = vrot.lane.b32.xlu0 %v1257, 112
      %v1260 = vpop.permute.xlu0 %1259
      %v1262 = vadd.f32 %v1257, %v1260
      %1264 = vrot.lane.b32.xlu0 %v1262, 96
      %v1265 = vpop.permute.xlu0 %1264
      %v1267 = vadd.f32 %v1262, %v1265
      %v1268 = vmul.f32 %v1267, %v1225
      %v1269 = vadd.f32 %v1244, %v1268
      %v1270 = vmul.f32 %v1269, %v1225
      %1271 = vst.msk [vmem:[%s656 + $0x1] sm:$0x1] %vm1229, %v1270
      %s1272 = scalar_lea.vmem %s641, 2
      %v1273 = vld [vmem:[%s1272] sm:$0x1]
      %v1274 = vunpack.c.l.bf16 %v1273
      %s1275 = scalar_lea.vmem %s649, 2
      %v1276 = vld [vmem:[%s1275] sm:$0x1]
      %v1277 = vunpack.c.l.bf16 %v1276
      %v1278 = vmul.f32 %v919, %v1274
      %v1279 = vsel %vm1193, %v1278, 0.0
      %v1280 = vrot.slane %v1279, 4
      %v1281 = vadd.f32 %v1279, %v1280
      %v1282 = vrot.slane %v1281, 2
      %v1283 = vadd.f32 %v1281, %v1282
      %v1284 = vrot.slane %v1283, 1
      %v1285 = vadd.f32 %v1283, %v1284
      %v1286 = vmul.f32 %v1183, %v1277
      %v1287 = vsel %vm1202, %v1286, 0.0
      %v1288 = vrot.slane %v1287, 4
      %v1289 = vadd.f32 %v1287, %v1288
      %v1290 = vrot.slane %v1289, 2
      %v1291 = vadd.f32 %v1289, %v1290
      %v1292 = vrot.slane %v1291, 1
      %v1293 = vadd.f32 %v1291, %v1292
      %1295 = vrot.lane.b32.xlu0 %v1293, 120
      %v1296 = vpop.permute.xlu0 %1295
      %v1298 = vadd.f32 %v1293, %v1296
      %1300 = vrot.lane.b32.xlu0 %v1298, 112
      %v1301 = vpop.permute.xlu0 %1300
      %v1303 = vadd.f32 %v1298, %v1301
      %1305 = vrot.lane.b32.xlu0 %v1303, 96
      %v1306 = vpop.permute.xlu0 %1305
      %v1308 = vadd.f32 %v1303, %v1306
      %v1309 = vmul.f32 %v1308, %v1225
      %v1310 = vadd.f32 %v1285, %v1309
      %v1311 = vmul.f32 %v1310, %v1225
      %1312 = vst.msk [vmem:[%s656 + $0x2] sm:$0x1] %vm1229, %v1311
      %p1313 = scmp.lt.s32.totalorder %s38, 1
      %s1314 = scalar_select %p1313, %s38, 1
      %p1315 = scmp.lt.s32.totalorder %s39, 0
      %s1316 = scalar_select %p1315, %s39, 0
      %s1317 = sadd.s32 %s1316, %s1314
      %s1318 = smul.addr %s1317, 4
      %s1319 = scalar_lea.vmem %s17, %s1318
      // Predicated region
      $region85: #{tpu_custom_call.1} parent=83 // pred_check
        %p1320 = pneg %p430
      $region86: #{tpu_custom_call.1} parent=83 // pred_check_branch
        %1322 = sbr.rel (%p1320) target = $region88
      $region87: #{tpu_custom_call.1} parent=83 // pred_region
        _
      $region88: #{tpu_custom_call.1} parent=83 // pred_fallthru
        _
    $region84: #{tpu_custom_call.1} parent=5 // pred_fallthru
      _
    %p1323 = scmp.le.s32.totalorder 2, %s29
    // Predicated region
    $region89: #{tpu_custom_call.1} parent=5 // pred_check
      %p1324 = pneg %p1323
    $region90: #{tpu_custom_call.1} parent=5 // pred_check_branch
      %1326 = sbr.rel (%p1324) target = $region92
    $region91: #{tpu_custom_call.1} parent=5 // pred_region
      %s1327 = ssub.s32 %s29, 2
      // Predicated region
      $region93: #{tpu_custom_call.1} parent=91 // pred_check
        %p1328 = pneg %p436
      $region94: #{tpu_custom_call.1} parent=91 // pred_check_branch
        %1330 = sbr.rel (%p1328) target = $region96
      $region95: #{tpu_custom_call.1} parent=91 // pred_region
        %p1331 = scmp.lt.s32.totalorder %s40, 1
        %s1332 = scalar_select %p1331, %s40, 1
        %p1333 = scmp.lt.s32.totalorder %s41, 0
        %s1334 = scalar_select %p1333, %s41, 0
        %s1335 = sadd.s32 %s1334, %s1332
        %s1336 = smul.addr %s1335, 4
        %s1337 = scalar_lea.vmem %s17, %s1336
      $region96: #{tpu_custom_call.1} parent=91 // pred_fallthru
        _
    $region92: #{tpu_custom_call.1} parent=5 // pred_fallthru
      _
  $region6: #{tpu_custom_call.1} parent=0 // loop_footer
    %s33 = sadd.s32 1, %s29
  $region7: #{tpu_custom_call.1} parent=0 // loop_footer_branch
    %28 = sbr.rel target = $region3
  $region8: #{tpu_custom_call.1} parent=0 // loop_exit
    _

</llo_original>
